<compile_context>
chip_gen: v7x
topology: tpu7x:2x2x1
jax: 0.10.0
libtpu: 0.0.40
codegen_flags: <defaults>
</compile_context>

<pallas_src>
import functools
import math

import jax
import jax.numpy as jnp
from jax.experimental import pallas as pl
from jax.experimental.pallas import tpu as pltpu

# column layout of the per-layer (H, 6) vector slab
_B_ATTN, _LN1W, _LN1B, _B2, _LN2W, _LN2B = range(6)


def _layer_norm(x, w, b, eps=1e-5):
    """LayerNorm over the feature (sublane) axis of an (F, B) activation."""
    mu = jnp.mean(x, axis=0, keepdims=True)
    xc = x - mu
    var = jnp.mean(xc * xc, axis=0, keepdims=True)
    return xc * jax.lax.rsqrt(var + eps) * w + b


def _model_kernel(num_layers,
                  x_ref, emb_w_ref, emb_b_ref,
                  wat_ref, vec_ref, w1_ref, b1_ref, w2_ref,
                  fc_w_ref, fc_b_ref, out_ref):
    # ---- embedding + (bias + positional-encoding row 0, fused on host) ----
    xb = x_ref[...].astype(jnp.bfloat16)                       # (d_in, TB)
    y = jnp.dot(emb_w_ref[...], xb, preferred_element_type=jnp.float32)
    y = y + emb_b_ref[...]                                      # (H, TB) f32

    # NOTE: num_heads does not affect the math at seq_len == 1 (softmax over
    # a single key is 1 for every head).  Static unroll is fine at small
    # num_layers; switch to lax.fori_loop with dynamic ref[l] indexing if the
    # model is scaled to many layers.
    for l in range(num_layers):
        vec = vec_ref[l]                                        # (H, 6) f32
        b_attn = vec[:, _B_ATTN:_B_ATTN + 1]
        ln1w, ln1b = vec[:, _LN1W:_LN1W + 1], vec[:, _LN1B:_LN1B + 1]
        b2 = vec[:, _B2:_B2 + 1]
        ln2w, ln2b = vec[:, _LN2W:_LN2W + 1], vec[:, _LN2B:_LN2B + 1]

        # --- self attention (seq_len == 1 -> host-fused affine map) --------
        sa = jnp.dot(wat_ref[l], y.astype(jnp.bfloat16),
                     preferred_element_type=jnp.float32) + b_attn
        y = _layer_norm(y + sa, ln1w, ln1b)

        # --- feed-forward (relu, post-norm) ---------------------------------
        h = jnp.dot(w1_ref[l], y.astype(jnp.bfloat16),
                    preferred_element_type=jnp.float32) + b1_ref[l]
        h = jnp.maximum(h, 0.0)
        h = jnp.dot(w2_ref[l], h.astype(jnp.bfloat16),
                    preferred_element_type=jnp.float32) + b2
        y = _layer_norm(y + h, ln2w, ln2b)

    # ---- output projection (lane-dense (out_dim, TB) store) ---------------
    out_ref[...] = (
        jnp.dot(fc_w_ref[...], y.astype(jnp.bfloat16),
                preferred_element_type=jnp.float32)
        + fc_b_ref[...]
    )


def _replicated_spec(arr):
    """Full-array block, same block for every grid step."""
    n = arr.ndim
    return pl.BlockSpec(arr.shape, lambda b, n=n: (0,) * n)


def _pick_tile(batch):
    """Batch-tile (lane) width: whole batch if small, else >=2 grid steps."""
    if batch <= 256:
        return batch                       # single block, full-extent lane dim
    half = (batch + 1) // 2                # aim for >= 2 steps (v7x megacore)
    tile = ((half + 127) // 128) * 128     # lane-aligned
    return min(tile, 1024)


def model_forward(x, params, *, num_layers):
    batch, d_in = x.shape
    out_dim = params["fc_wT"].shape[0]

    xT = x.T                               # (d_in, batch): batch on lane axis
    tile_b = _pick_tile(batch)
    grid = pl.cdiv(batch, tile_b)

    args = [
        xT,
        params["emb_wT"], params["emb_bT"],
        params["w_attnT"], params["vecs"],
        params["w1T"], params["b1T"], params["w2T"],
        params["fc_wT"], params["fc_bT"],
    ]
    in_specs = [pl.BlockSpec((d_in, tile_b), lambda b: (0, b))]
    in_specs += [_replicated_spec(a) for a in args[1:]]

    outT = pl.pallas_call(
        functools.partial(_model_kernel, num_layers),
        out_shape=jax.ShapeDtypeStruct((out_dim, batch), jnp.float32),
        grid=(grid,),
        in_specs=in_specs,
        out_specs=pl.BlockSpec((out_dim, tile_b), lambda b: (0, b)),
        compiler_params=pltpu.CompilerParams(
            dimension_semantics=("parallel",)),
    )(*args)

    # match PyTorch output shape (B, 1, output_size) coming from x.unsqueeze(1)
    return outT.T.reshape(batch, 1, out_dim)


def _sinusoidal_pe_row0(hidden):
    # standard sinusoidal PE, position 0 only (seq_len == 1), feature-major
    pos = 0.0
    i = jnp.arange(0, hidden, 2, dtype=jnp.float32)
    div = jnp.exp(i * (-math.log(10000.0) / hidden))
    pe = jnp.zeros((hidden,), jnp.float32)
    pe = pe.at[0::2].set(jnp.sin(pos * div))
    pe = pe.at[1::2].set(jnp.cos(pos * div))
    return pe.reshape(hidden, 1)


def init_params(key, input_size, hidden, output_size, ffn, num_layers):
    """All weights stored feature-major (W @ x convention); matmul weights bf16."""

    def nxt():
        nonlocal key
        key, sub = jax.random.split(key)
        return sub

    def w(shape, scale=0.05):
        return jax.random.normal(nxt(), shape, jnp.float32) * scale

    emb_w = w((hidden, input_size))
    # embedding bias + positional-encoding row 0, fused on the host
    emb_b = w((hidden, 1)) + _sinusoidal_pe_row0(hidden)

    w_attn, vecs, w1, b1, w2 = [], [], [], [], []
    for _ in range(num_layers):
        wv = w((hidden, hidden))           # value projection (feature-major)
        wo = w((hidden, hidden))           # attention output projection
        bv = w((hidden, 1))
        bo = w((hidden, 1))
        # seq_len == 1 -> attention weight == 1 -> MHA is affine; fuse on host
        w_attn.append(wo @ wv)
        b_attn = wo @ bv + bo
        ln1w = jnp.ones((hidden, 1), jnp.float32)
        ln1b = jnp.zeros((hidden, 1), jnp.float32)
        w1.append(w((ffn, hidden)))        # linear1 (feature-major)
        b1.append(w((ffn, 1)))
        w2.append(w((hidden, ffn)))        # linear2 (feature-major)
        b2 = w((hidden, 1))
        ln2w = jnp.ones((hidden, 1), jnp.float32)
        ln2b = jnp.zeros((hidden, 1), jnp.float32)
        vecs.append(jnp.concatenate([b_attn, ln1w, ln1b, b2, ln2w, ln2b],
                                    axis=1))

    params = {
        "emb_wT": emb_w.astype(jnp.bfloat16),              # (H, in)
        "emb_bT": emb_b,                                    # (H, 1) f32
        "w_attnT": jnp.stack(w_attn).astype(jnp.bfloat16),  # (L, H, H)
        "vecs": jnp.stack(vecs),                            # (L, H, 6) f32
        "w1T": jnp.stack(w1).astype(jnp.bfloat16),          # (L, F, H)
        "b1T": jnp.stack(b1),                               # (L, F, 1) f32
        "w2T": jnp.stack(w2).astype(jnp.bfloat16),          # (L, H, F)
        "fc_wT": w((output_size, hidden)).astype(jnp.bfloat16),
        "fc_bT": w((output_size, 1)),
    }
    return params


def reference_forward(xT, p, num_layers):
    """Pure-JAX f32 reference on the same (bf16-stored) weights."""
    y = p["emb_wT"].astype(jnp.float32) @ xT + p["emb_bT"]
    for l in range(num_layers):
        vec = p["vecs"][l]
        b_attn = vec[:, _B_ATTN:_B_ATTN + 1]
        ln1w, ln1b = vec[:, _LN1W:_LN1W + 1], vec[:, _LN1B:_LN1B + 1]
        b2 = vec[:, _B2:_B2 + 1]
        ln2w, ln2b = vec[:, _LN2W:_LN2W + 1], vec[:, _LN2B:_LN2B + 1]
        sa = p["w_attnT"][l].astype(jnp.float32) @ y + b_attn
        y = _layer_norm(y + sa, ln1w, ln1b)
        h = jnp.maximum(p["w1T"][l].astype(jnp.float32) @ y + p["b1T"][l], 0.0)
        h = p["w2T"][l].astype(jnp.float32) @ h + b2
        y = _layer_norm(y + h, ln2w, ln2b)
    return p["fc_wT"].astype(jnp.float32) @ y + p["fc_bT"]


if __name__ == "__main__":
    INPUT_SIZE, HIDDEN, OUTPUT_SIZE = 16, 32, 4
    NUM_HEADS, NUM_LAYERS, FFN_DIM = 4, 2, 64   # NUM_HEADS has no effect at S=1
    BATCH = 2

    key = jax.random.PRNGKey(0)
    key, pkey, xkey = jax.random.split(key, 3)
    params = init_params(pkey, INPUT_SIZE, HIDDEN, OUTPUT_SIZE, FFN_DIM,
                         NUM_LAYERS)
    x = jax.random.normal(xkey, (BATCH, INPUT_SIZE), jnp.float32)

    out = model_forward(x, params, num_layers=NUM_LAYERS)
    jax.block_until_ready(out)
    assert out.shape == (BATCH, 1, OUTPUT_SIZE), out.shape
    assert bool(jnp.all(jnp.isfinite(out)))

    ref = reference_forward(x.T, params, NUM_LAYERS).T.reshape(
        BATCH, 1, OUTPUT_SIZE)
    # bf16 matmul inputs vs. f32 reference -> loose tolerance
    assert jnp.allclose(out, ref, atol=5e-2, rtol=5e-2), (
        jnp.max(jnp.abs(out - ref)))

    print("KERNEL_OK")
</pallas_src>

<mosaic_0001>
module attributes {stable_mosaic.version = 11 : i64} {
  func.func @_model_kernel(%arg0: i32, %arg1: memref<16x2xf32, #tpu.memory_space<vmem>>, %arg2: memref<32x16xbf16, #tpu.memory_space<vmem>>, %arg3: memref<32x1xf32, #tpu.memory_space<vmem>>, %arg4: memref<2x32x32xbf16, #tpu.memory_space<vmem>>, %arg5: memref<2x32x6xf32, #tpu.memory_space<vmem>>, %arg6: memref<2x64x32xbf16, #tpu.memory_space<vmem>>, %arg7: memref<2x64x1xf32, #tpu.memory_space<vmem>>, %arg8: memref<2x32x64xbf16, #tpu.memory_space<vmem>>, %arg9: memref<4x32xbf16, #tpu.memory_space<vmem>>, %arg10: memref<4x1xf32, #tpu.memory_space<vmem>>, %arg11: memref<4x2xf32, #tpu.memory_space<vmem>>) attributes {dimension_semantics = [#tpu.dimension_semantics<parallel>], iteration_bounds = array<i64: 1>, scalar_prefetch = 0 : i64, scratch_operands = 0 : i64, tpu.core_type = #tpu.core_type<tc>, window_params = [{transform_indices = @transform_0, window_bounds = array<i64: 16, 2>}, {pipeline_mode = #tpu.pipeline_mode<synchronous>, transform_indices = @transform_1, window_bounds = array<i64: 32, 16>}, {pipeline_mode = #tpu.pipeline_mode<synchronous>, transform_indices = @transform_2, window_bounds = array<i64: 32, 1>}, {pipeline_mode = #tpu.pipeline_mode<synchronous>, transform_indices = @transform_3, window_bounds = array<i64: 2, 32, 32>}, {pipeline_mode = #tpu.pipeline_mode<synchronous>, transform_indices = @transform_4, window_bounds = array<i64: 2, 32, 6>}, {pipeline_mode = #tpu.pipeline_mode<synchronous>, transform_indices = @transform_5, window_bounds = array<i64: 2, 64, 32>}, {pipeline_mode = #tpu.pipeline_mode<synchronous>, transform_indices = @transform_6, window_bounds = array<i64: 2, 64, 1>}, {pipeline_mode = #tpu.pipeline_mode<synchronous>, transform_indices = @transform_7, window_bounds = array<i64: 2, 32, 64>}, {pipeline_mode = #tpu.pipeline_mode<synchronous>, transform_indices = @transform_8, window_bounds = array<i64: 4, 32>}, {pipeline_mode = #tpu.pipeline_mode<synchronous>, transform_indices = @transform_9, window_bounds = array<i64: 4, 1>}, {transform_indices = @transform_10, window_bounds = array<i64: 4, 2>}]} {
    %c0 = arith.constant 0 : index
    %c0_0 = arith.constant 0 : index
    %0 = vector.load %arg1[%c0, %c0_0] : memref<16x2xf32, #tpu.memory_space<vmem>>, vector<16x2xf32>
    %1 = arith.truncf %0 : vector<16x2xf32> to vector<16x2xbf16>
    %c0_1 = arith.constant 0 : index
    %c0_2 = arith.constant 0 : index
    %2 = vector.load %arg2[%c0_1, %c0_2] : memref<32x16xbf16, #tpu.memory_space<vmem>>, vector<32x16xbf16>
    %cst = arith.constant dense<0.000000e+00> : vector<32x2xf32>
    %3 = tpu.matmul %2, %1, %cst {dimension_numbers = #tpu.dot_dimension_numbers<[1], [0], [0], [1], [0, 0, 1, 1], [], []>} : vector<32x16xbf16>, vector<16x2xbf16>, vector<32x2xf32> -> vector<32x2xf32>
    %c0_3 = arith.constant 0 : index
    %c0_4 = arith.constant 0 : index
    %4 = vector.load %arg3[%c0_3, %c0_4] : memref<32x1xf32, #tpu.memory_space<vmem>>, vector<32x1xf32>
    %5 = vector.broadcast %4 : vector<32x1xf32> to vector<32x2xf32>
    %6 = arith.addf %3, %5 : vector<32x2xf32>
    %c0_5 = arith.constant 0 : index
    %c0_6 = arith.constant 0 : index
    %c0_7 = arith.constant 0 : index
    %7 = vector.load %arg5[%c0_5, %c0_6, %c0_7] : memref<2x32x6xf32, #tpu.memory_space<vmem>>, vector<1x32x6xf32>
    %8 = vector.shape_cast %7 : vector<1x32x6xf32> to vector<32x6xf32>
    %9 = vector.extract_strided_slice %8 {offsets = [0, 0], sizes = [32, 1], strides = [1, 1]} : vector<32x6xf32> to vector<32x1xf32>
    %10 = vector.extract_strided_slice %8 {offsets = [0, 1], sizes = [32, 1], strides = [1, 1]} : vector<32x6xf32> to vector<32x1xf32>
    %11 = vector.extract_strided_slice %8 {offsets = [0, 2], sizes = [32, 1], strides = [1, 1]} : vector<32x6xf32> to vector<32x1xf32>
    %12 = vector.extract_strided_slice %8 {offsets = [0, 3], sizes = [32, 1], strides = [1, 1]} : vector<32x6xf32> to vector<32x1xf32>
    %13 = vector.extract_strided_slice %8 {offsets = [0, 4], sizes = [32, 1], strides = [1, 1]} : vector<32x6xf32> to vector<32x1xf32>
    %14 = vector.extract_strided_slice %8 {offsets = [0, 5], sizes = [32, 1], strides = [1, 1]} : vector<32x6xf32> to vector<32x1xf32>
    %c0_8 = arith.constant 0 : index
    %c0_9 = arith.constant 0 : index
    %c0_10 = arith.constant 0 : index
    %15 = vector.load %arg4[%c0_8, %c0_9, %c0_10] : memref<2x32x32xbf16, #tpu.memory_space<vmem>>, vector<1x32x32xbf16>
    %16 = vector.shape_cast %15 : vector<1x32x32xbf16> to vector<32x32xbf16>
    %17 = arith.truncf %6 : vector<32x2xf32> to vector<32x2xbf16>
    %cst_11 = arith.constant dense<0.000000e+00> : vector<32x2xf32>
    %18 = tpu.matmul %16, %17, %cst_11 {dimension_numbers = #tpu.dot_dimension_numbers<[1], [0], [0], [1], [0, 0, 1, 1], [], []>} : vector<32x32xbf16>, vector<32x2xbf16>, vector<32x2xf32> -> vector<32x2xf32>
    %19 = vector.broadcast %9 : vector<32x1xf32> to vector<32x2xf32>
    %20 = arith.addf %18, %19 : vector<32x2xf32>
    %21 = arith.addf %6, %20 : vector<32x2xf32>
    %cst_12 = arith.constant dense<0.000000e+00> : vector<2xf32>
    %22 = vector.multi_reduction <add>, %21, %cst_12 [0] : vector<32x2xf32> to vector<2xf32>
    %23 = vector.shape_cast %22 : vector<2xf32> to vector<1x2xf32>
    %cst_13 = arith.constant 3.200000e+01 : f32
    %24 = vector.broadcast %cst_13 : f32 to vector<1x2xf32>
    %25 = arith.divf %23, %24 : vector<1x2xf32>
    %26 = vector.broadcast %25 : vector<1x2xf32> to vector<32x2xf32>
    %27 = arith.subf %21, %26 : vector<32x2xf32>
    %28 = arith.mulf %27, %27 : vector<32x2xf32>
    %cst_14 = arith.constant dense<0.000000e+00> : vector<2xf32>
    %29 = vector.multi_reduction <add>, %28, %cst_14 [0] : vector<32x2xf32> to vector<2xf32>
    %30 = vector.shape_cast %29 : vector<2xf32> to vector<1x2xf32>
    %cst_15 = arith.constant 3.200000e+01 : f32
    %31 = vector.broadcast %cst_15 : f32 to vector<1x2xf32>
    %32 = arith.divf %30, %31 : vector<1x2xf32>
    %cst_16 = arith.constant 9.99999974E-6 : f32
    %33 = vector.broadcast %cst_16 : f32 to vector<1x2xf32>
    %34 = arith.addf %32, %33 : vector<1x2xf32>
    %35 = math.rsqrt %34 : vector<1x2xf32>
    %36 = vector.broadcast %35 : vector<1x2xf32> to vector<32x2xf32>
    %37 = arith.mulf %27, %36 : vector<32x2xf32>
    %38 = vector.broadcast %10 : vector<32x1xf32> to vector<32x2xf32>
    %39 = arith.mulf %37, %38 : vector<32x2xf32>
    %40 = vector.broadcast %11 : vector<32x1xf32> to vector<32x2xf32>
    %41 = arith.addf %39, %40 : vector<32x2xf32>
    %c0_17 = arith.constant 0 : index
    %c0_18 = arith.constant 0 : index
    %c0_19 = arith.constant 0 : index
    %42 = vector.load %arg6[%c0_17, %c0_18, %c0_19] : memref<2x64x32xbf16, #tpu.memory_space<vmem>>, vector<1x64x32xbf16>
    %43 = vector.shape_cast %42 : vector<1x64x32xbf16> to vector<64x32xbf16>
    %44 = arith.truncf %41 : vector<32x2xf32> to vector<32x2xbf16>
    %cst_20 = arith.constant dense<0.000000e+00> : vector<64x2xf32>
    %45 = tpu.matmul %43, %44, %cst_20 {dimension_numbers = #tpu.dot_dimension_numbers<[1], [0], [0], [1], [0, 0, 1, 1], [], []>} : vector<64x32xbf16>, vector<32x2xbf16>, vector<64x2xf32> -> vector<64x2xf32>
    %c0_21 = arith.constant 0 : index
    %c0_22 = arith.constant 0 : index
    %c0_23 = arith.constant 0 : index
    %46 = vector.load %arg7[%c0_21, %c0_22, %c0_23] : memref<2x64x1xf32, #tpu.memory_space<vmem>>, vector<1x64x1xf32>
    %47 = vector.shape_cast %46 : vector<1x64x1xf32> to vector<64x1xf32>
    %48 = vector.broadcast %47 : vector<64x1xf32> to vector<64x2xf32>
    %49 = arith.addf %45, %48 : vector<64x2xf32>
    %cst_24 = arith.constant 0.000000e+00 : f32
    %50 = vector.broadcast %cst_24 : f32 to vector<64x2xf32>
    %51 = arith.maximumf %49, %50 : vector<64x2xf32>
    %c0_25 = arith.constant 0 : index
    %c0_26 = arith.constant 0 : index
    %c0_27 = arith.constant 0 : index
    %52 = vector.load %arg8[%c0_25, %c0_26, %c0_27] : memref<2x32x64xbf16, #tpu.memory_space<vmem>>, vector<1x32x64xbf16>
    %53 = vector.shape_cast %52 : vector<1x32x64xbf16> to vector<32x64xbf16>
    %54 = arith.truncf %51 : vector<64x2xf32> to vector<64x2xbf16>
    %cst_28 = arith.constant dense<0.000000e+00> : vector<32x2xf32>
    %55 = tpu.matmul %53, %54, %cst_28 {dimension_numbers = #tpu.dot_dimension_numbers<[1], [0], [0], [1], [0, 0, 1, 1], [], []>} : vector<32x64xbf16>, vector<64x2xbf16>, vector<32x2xf32> -> vector<32x2xf32>
    %56 = vector.broadcast %12 : vector<32x1xf32> to vector<32x2xf32>
    %57 = arith.addf %55, %56 : vector<32x2xf32>
    %58 = arith.addf %41, %57 : vector<32x2xf32>
    %cst_29 = arith.constant dense<0.000000e+00> : vector<2xf32>
    %59 = vector.multi_reduction <add>, %58, %cst_29 [0] : vector<32x2xf32> to vector<2xf32>
    %60 = vector.shape_cast %59 : vector<2xf32> to vector<1x2xf32>
    %cst_30 = arith.constant 3.200000e+01 : f32
    %61 = vector.broadcast %cst_30 : f32 to vector<1x2xf32>
    %62 = arith.divf %60, %61 : vector<1x2xf32>
    %63 = vector.broadcast %62 : vector<1x2xf32> to vector<32x2xf32>
    %64 = arith.subf %58, %63 : vector<32x2xf32>
    %65 = arith.mulf %64, %64 : vector<32x2xf32>
    %cst_31 = arith.constant dense<0.000000e+00> : vector<2xf32>
    %66 = vector.multi_reduction <add>, %65, %cst_31 [0] : vector<32x2xf32> to vector<2xf32>
    %67 = vector.shape_cast %66 : vector<2xf32> to vector<1x2xf32>
    %cst_32 = arith.constant 3.200000e+01 : f32
    %68 = vector.broadcast %cst_32 : f32 to vector<1x2xf32>
    %69 = arith.divf %67, %68 : vector<1x2xf32>
    %cst_33 = arith.constant 9.99999974E-6 : f32
    %70 = vector.broadcast %cst_33 : f32 to vector<1x2xf32>
    %71 = arith.addf %69, %70 : vector<1x2xf32>
    %72 = math.rsqrt %71 : vector<1x2xf32>
    %73 = vector.broadcast %72 : vector<1x2xf32> to vector<32x2xf32>
    %74 = arith.mulf %64, %73 : vector<32x2xf32>
    %75 = vector.broadcast %13 : vector<32x1xf32> to vector<32x2xf32>
    %76 = arith.mulf %74, %75 : vector<32x2xf32>
    %77 = vector.broadcast %14 : vector<32x1xf32> to vector<32x2xf32>
    %78 = arith.addf %76, %77 : vector<32x2xf32>
    %c1 = arith.constant 1 : index
    %c0_34 = arith.constant 0 : index
    %c0_35 = arith.constant 0 : index
    %79 = vector.load %arg5[%c1, %c0_34, %c0_35] : memref<2x32x6xf32, #tpu.memory_space<vmem>>, vector<1x32x6xf32>
    %80 = vector.shape_cast %79 : vector<1x32x6xf32> to vector<32x6xf32>
    %81 = vector.extract_strided_slice %80 {offsets = [0, 0], sizes = [32, 1], strides = [1, 1]} : vector<32x6xf32> to vector<32x1xf32>
    %82 = vector.extract_strided_slice %80 {offsets = [0, 1], sizes = [32, 1], strides = [1, 1]} : vector<32x6xf32> to vector<32x1xf32>
    %83 = vector.extract_strided_slice %80 {offsets = [0, 2], sizes = [32, 1], strides = [1, 1]} : vector<32x6xf32> to vector<32x1xf32>
    %84 = vector.extract_strided_slice %80 {offsets = [0, 3], sizes = [32, 1], strides = [1, 1]} : vector<32x6xf32> to vector<32x1xf32>
    %85 = vector.extract_strided_slice %80 {offsets = [0, 4], sizes = [32, 1], strides = [1, 1]} : vector<32x6xf32> to vector<32x1xf32>
    %86 = vector.extract_strided_slice %80 {offsets = [0, 5], sizes = [32, 1], strides = [1, 1]} : vector<32x6xf32> to vector<32x1xf32>
    %c1_36 = arith.constant 1 : index
    %c0_37 = arith.constant 0 : index
    %c0_38 = arith.constant 0 : index
    %87 = vector.load %arg4[%c1_36, %c0_37, %c0_38] : memref<2x32x32xbf16, #tpu.memory_space<vmem>>, vector<1x32x32xbf16>
    %88 = vector.shape_cast %87 : vector<1x32x32xbf16> to vector<32x32xbf16>
    %89 = arith.truncf %78 : vector<32x2xf32> to vector<32x2xbf16>
    %cst_39 = arith.constant dense<0.000000e+00> : vector<32x2xf32>
    %90 = tpu.matmul %88, %89, %cst_39 {dimension_numbers = #tpu.dot_dimension_numbers<[1], [0], [0], [1], [0, 0, 1, 1], [], []>} : vector<32x32xbf16>, vector<32x2xbf16>, vector<32x2xf32> -> vector<32x2xf32>
    %91 = vector.broadcast %81 : vector<32x1xf32> to vector<32x2xf32>
    %92 = arith.addf %90, %91 : vector<32x2xf32>
    %93 = arith.addf %78, %92 : vector<32x2xf32>
    %cst_40 = arith.constant dense<0.000000e+00> : vector<2xf32>
    %94 = vector.multi_reduction <add>, %93, %cst_40 [0] : vector<32x2xf32> to vector<2xf32>
    %95 = vector.shape_cast %94 : vector<2xf32> to vector<1x2xf32>
    %cst_41 = arith.constant 3.200000e+01 : f32
    %96 = vector.broadcast %cst_41 : f32 to vector<1x2xf32>
    %97 = arith.divf %95, %96 : vector<1x2xf32>
    %98 = vector.broadcast %97 : vector<1x2xf32> to vector<32x2xf32>
    %99 = arith.subf %93, %98 : vector<32x2xf32>
    %100 = arith.mulf %99, %99 : vector<32x2xf32>
    %cst_42 = arith.constant dense<0.000000e+00> : vector<2xf32>
    %101 = vector.multi_reduction <add>, %100, %cst_42 [0] : vector<32x2xf32> to vector<2xf32>
    %102 = vector.shape_cast %101 : vector<2xf32> to vector<1x2xf32>
    %cst_43 = arith.constant 3.200000e+01 : f32
    %103 = vector.broadcast %cst_43 : f32 to vector<1x2xf32>
    %104 = arith.divf %102, %103 : vector<1x2xf32>
    %cst_44 = arith.constant 9.99999974E-6 : f32
    %105 = vector.broadcast %cst_44 : f32 to vector<1x2xf32>
    %106 = arith.addf %104, %105 : vector<1x2xf32>
    %107 = math.rsqrt %106 : vector<1x2xf32>
    %108 = vector.broadcast %107 : vector<1x2xf32> to vector<32x2xf32>
    %109 = arith.mulf %99, %108 : vector<32x2xf32>
    %110 = vector.broadcast %82 : vector<32x1xf32> to vector<32x2xf32>
    %111 = arith.mulf %109, %110 : vector<32x2xf32>
    %112 = vector.broadcast %83 : vector<32x1xf32> to vector<32x2xf32>
    %113 = arith.addf %111, %112 : vector<32x2xf32>
    %c1_45 = arith.constant 1 : index
    %c0_46 = arith.constant 0 : index
    %c0_47 = arith.constant 0 : index
    %114 = vector.load %arg6[%c1_45, %c0_46, %c0_47] : memref<2x64x32xbf16, #tpu.memory_space<vmem>>, vector<1x64x32xbf16>
    %115 = vector.shape_cast %114 : vector<1x64x32xbf16> to vector<64x32xbf16>
    %116 = arith.truncf %113 : vector<32x2xf32> to vector<32x2xbf16>
    %cst_48 = arith.constant dense<0.000000e+00> : vector<64x2xf32>
    %117 = tpu.matmul %115, %116, %cst_48 {dimension_numbers = #tpu.dot_dimension_numbers<[1], [0], [0], [1], [0, 0, 1, 1], [], []>} : vector<64x32xbf16>, vector<32x2xbf16>, vector<64x2xf32> -> vector<64x2xf32>
    %c1_49 = arith.constant 1 : index
    %c0_50 = arith.constant 0 : index
    %c0_51 = arith.constant 0 : index
    %118 = vector.load %arg7[%c1_49, %c0_50, %c0_51] : memref<2x64x1xf32, #tpu.memory_space<vmem>>, vector<1x64x1xf32>
    %119 = vector.shape_cast %118 : vector<1x64x1xf32> to vector<64x1xf32>
    %120 = vector.broadcast %119 : vector<64x1xf32> to vector<64x2xf32>
    %121 = arith.addf %117, %120 : vector<64x2xf32>
    %cst_52 = arith.constant 0.000000e+00 : f32
    %122 = vector.broadcast %cst_52 : f32 to vector<64x2xf32>
    %123 = arith.maximumf %121, %122 : vector<64x2xf32>
    %c1_53 = arith.constant 1 : index
    %c0_54 = arith.constant 0 : index
    %c0_55 = arith.constant 0 : index
    %124 = vector.load %arg8[%c1_53, %c0_54, %c0_55] : memref<2x32x64xbf16, #tpu.memory_space<vmem>>, vector<1x32x64xbf16>
    %125 = vector.shape_cast %124 : vector<1x32x64xbf16> to vector<32x64xbf16>
    %126 = arith.truncf %123 : vector<64x2xf32> to vector<64x2xbf16>
    %cst_56 = arith.constant dense<0.000000e+00> : vector<32x2xf32>
    %127 = tpu.matmul %125, %126, %cst_56 {dimension_numbers = #tpu.dot_dimension_numbers<[1], [0], [0], [1], [0, 0, 1, 1], [], []>} : vector<32x64xbf16>, vector<64x2xbf16>, vector<32x2xf32> -> vector<32x2xf32>
    %128 = vector.broadcast %84 : vector<32x1xf32> to vector<32x2xf32>
    %129 = arith.addf %127, %128 : vector<32x2xf32>
    %130 = arith.addf %113, %129 : vector<32x2xf32>
    %cst_57 = arith.constant dense<0.000000e+00> : vector<2xf32>
    %131 = vector.multi_reduction <add>, %130, %cst_57 [0] : vector<32x2xf32> to vector<2xf32>
    %132 = vector.shape_cast %131 : vector<2xf32> to vector<1x2xf32>
    %cst_58 = arith.constant 3.200000e+01 : f32
    %133 = vector.broadcast %cst_58 : f32 to vector<1x2xf32>
    %134 = arith.divf %132, %133 : vector<1x2xf32>
    %135 = vector.broadcast %134 : vector<1x2xf32> to vector<32x2xf32>
    %136 = arith.subf %130, %135 : vector<32x2xf32>
    %137 = arith.mulf %136, %136 : vector<32x2xf32>
    %cst_59 = arith.constant dense<0.000000e+00> : vector<2xf32>
    %138 = vector.multi_reduction <add>, %137, %cst_59 [0] : vector<32x2xf32> to vector<2xf32>
    %139 = vector.shape_cast %138 : vector<2xf32> to vector<1x2xf32>
    %cst_60 = arith.constant 3.200000e+01 : f32
    %140 = vector.broadcast %cst_60 : f32 to vector<1x2xf32>
    %141 = arith.divf %139, %140 : vector<1x2xf32>
    %cst_61 = arith.constant 9.99999974E-6 : f32
    %142 = vector.broadcast %cst_61 : f32 to vector<1x2xf32>
    %143 = arith.addf %141, %142 : vector<1x2xf32>
    %144 = math.rsqrt %143 : vector<1x2xf32>
    %145 = vector.broadcast %144 : vector<1x2xf32> to vector<32x2xf32>
    %146 = arith.mulf %136, %145 : vector<32x2xf32>
    %147 = vector.broadcast %85 : vector<32x1xf32> to vector<32x2xf32>
    %148 = arith.mulf %146, %147 : vector<32x2xf32>
    %149 = vector.broadcast %86 : vector<32x1xf32> to vector<32x2xf32>
    %150 = arith.addf %148, %149 : vector<32x2xf32>
    %c0_62 = arith.constant 0 : index
    %c0_63 = arith.constant 0 : index
    %151 = vector.load %arg9[%c0_62, %c0_63] : memref<4x32xbf16, #tpu.memory_space<vmem>>, vector<4x32xbf16>
    %152 = arith.truncf %150 : vector<32x2xf32> to vector<32x2xbf16>
    %cst_64 = arith.constant dense<0.000000e+00> : vector<4x2xf32>
    %153 = tpu.matmul %151, %152, %cst_64 {dimension_numbers = #tpu.dot_dimension_numbers<[1], [0], [0], [1], [0, 0, 1, 1], [], []>} : vector<4x32xbf16>, vector<32x2xbf16>, vector<4x2xf32> -> vector<4x2xf32>
    %c0_65 = arith.constant 0 : index
    %c0_66 = arith.constant 0 : index
    %154 = vector.load %arg10[%c0_65, %c0_66] : memref<4x1xf32, #tpu.memory_space<vmem>>, vector<4x1xf32>
    %155 = vector.broadcast %154 : vector<4x1xf32> to vector<4x2xf32>
    %156 = arith.addf %153, %155 : vector<4x2xf32>
    %c0_67 = arith.constant 0 : index
    %c0_68 = arith.constant 0 : index
    %157 = vector.load %arg11[%c0_67, %c0_68] : memref<4x2xf32, #tpu.memory_space<vmem>>, vector<4x2xf32>
    tpu.vector_store %arg11[%c0_67, %c0_68], %156 {strides = array<i32>} : memref<4x2xf32, #tpu.memory_space<vmem>>, vector<4x2xf32>,
    return
  }
  func.func @transform_0(%arg0: i32) -> (i32, i32) {
    %c0_i32 = arith.constant 0 : i32
    %c0_i32_0 = arith.constant 0 : i32
    return %c0_i32, %arg0 : i32, i32
  }
  func.func @transform_1(%arg0: i32) -> (i32, i32) {
    %c0_i32 = arith.constant 0 : i32
    %c0_i32_0 = arith.constant 0 : i32
    %c0_i32_1 = arith.constant 0 : i32
    return %c0_i32, %c0_i32_0 : i32, i32
  }
  func.func @transform_2(%arg0: i32) -> (i32, i32) {
    %c0_i32 = arith.constant 0 : i32
    %c0_i32_0 = arith.constant 0 : i32
    %c0_i32_1 = arith.constant 0 : i32
    return %c0_i32, %c0_i32_0 : i32, i32
  }
  func.func @transform_3(%arg0: i32) -> (i32, i32, i32) {
    %c0_i32 = arith.constant 0 : i32
    %c0_i32_0 = arith.constant 0 : i32
    %c0_i32_1 = arith.constant 0 : i32
    %c0_i32_2 = arith.constant 0 : i32
    return %c0_i32, %c0_i32_0, %c0_i32_1 : i32, i32, i32
  }
  func.func @transform_4(%arg0: i32) -> (i32, i32, i32) {
    %c0_i32 = arith.constant 0 : i32
    %c0_i32_0 = arith.constant 0 : i32
    %c0_i32_1 = arith.constant 0 : i32
    %c0_i32_2 = arith.constant 0 : i32
    return %c0_i32, %c0_i32_0, %c0_i32_1 : i32, i32, i32
  }
  func.func @transform_5(%arg0: i32) -> (i32, i32, i32) {
    %c0_i32 = arith.constant 0 : i32
    %c0_i32_0 = arith.constant 0 : i32
    %c0_i32_1 = arith.constant 0 : i32
    %c0_i32_2 = arith.constant 0 : i32
    return %c0_i32, %c0_i32_0, %c0_i32_1 : i32, i32, i32
  }
  func.func @transform_6(%arg0: i32) -> (i32, i32, i32) {
    %c0_i32 = arith.constant 0 : i32
    %c0_i32_0 = arith.constant 0 : i32
    %c0_i32_1 = arith.constant 0 : i32
    %c0_i32_2 = arith.constant 0 : i32
    return %c0_i32, %c0_i32_0, %c0_i32_1 : i32, i32, i32
  }
  func.func @transform_7(%arg0: i32) -> (i32, i32, i32) {
    %c0_i32 = arith.constant 0 : i32
    %c0_i32_0 = arith.constant 0 : i32
    %c0_i32_1 = arith.constant 0 : i32
    %c0_i32_2 = arith.constant 0 : i32
    return %c0_i32, %c0_i32_0, %c0_i32_1 : i32, i32, i32
  }
  func.func @transform_8(%arg0: i32) -> (i32, i32) {
    %c0_i32 = arith.constant 0 : i32
    %c0_i32_0 = arith.constant 0 : i32
    %c0_i32_1 = arith.constant 0 : i32
    return %c0_i32, %c0_i32_0 : i32, i32
  }
  func.func @transform_9(%arg0: i32) -> (i32, i32) {
    %c0_i32 = arith.constant 0 : i32
    %c0_i32_0 = arith.constant 0 : i32
    %c0_i32_1 = arith.constant 0 : i32
    return %c0_i32, %c0_i32_0 : i32, i32
  }
  func.func @transform_10(%arg0: i32) -> (i32, i32) {
    %c0_i32 = arith.constant 0 : i32
    %c0_i32_0 = arith.constant 0 : i32
    return %c0_i32, %arg0 : i32, i32
  }
}

</mosaic_0001>

<llo_original>
// kernel: tpu_custom_call.1
$region0: #{tpu_custom_call.1}
  #allocation0 [shape = 'u32[]', space=smem, size = 0x4, offset = 0x4, fixed_abs, tag = 'smem constant byte address 0x4 - core index']
  #allocation1 [shape = 'u32[144,128]{1,0:T(1,128)}', space=vmem, size = 0x12000, scoped, tag = 'internal scratch']
  %s0 = inlined_call_operand.vmem [shape: f32[16,2], index: 0, kind: input, shape index: {}]
  %s1 = inlined_call_operand.vmem [shape: bf16[32,16], index: 1, kind: input, shape index: {}]
  %s2 = inlined_call_operand.vmem [shape: f32[32,1], index: 2, kind: input, shape index: {}]
  %s3 = inlined_call_operand.vmem [shape: bf16[2,32,32], index: 3, kind: input, shape index: {}]
  %s4 = inlined_call_operand.vmem [shape: f32[2,32,6], index: 4, kind: input, shape index: {}]
  %s5 = inlined_call_operand.vmem [shape: bf16[2,64,32], index: 5, kind: input, shape index: {}]
  %s6 = inlined_call_operand.vmem [shape: f32[2,64,1], index: 6, kind: input, shape index: {}]
  %s7 = inlined_call_operand.vmem [shape: bf16[2,32,64], index: 7, kind: input, shape index: {}]
  %s8 = inlined_call_operand.vmem [shape: bf16[4,32], index: 8, kind: input, shape index: {}]
  %s9 = inlined_call_operand.vmem [shape: f32[4,1], index: 9, kind: input, shape index: {}]
  %s10 = inlined_call_operand.vmem [shape: f32[4,2], index: 10, kind: output, shape index: {}]
  %s11 = sld [smem:[#allocation0]]
  $region50: #{tpu_custom_call.1} parent=0
    _
  %s13 = ssub.s32 1, %s11
  %s14 = scalar_select 0, %s13, %s11
  // Predicated region
  $region2: #{tpu_custom_call.1} parent=0 // pred_check
    _
  $region3: #{tpu_custom_call.1} parent=0 // pred_check_branch
    %16 = sbr.rel (0) target = $region5
  $region4: #{tpu_custom_call.1} parent=0 // pred_region
    _
  $region5: #{tpu_custom_call.1} parent=0 // pred_fallthru
    _
  // Predicated region
  $region6: #{tpu_custom_call.1} parent=0 // pred_check
    _
  $region7: #{tpu_custom_call.1} parent=0 // pred_check_branch
    %18 = sbr.rel (0) target = $region9
  $region8: #{tpu_custom_call.1} parent=0 // pred_region
    _
  $region9: #{tpu_custom_call.1} parent=0 // pred_fallthru
    _
  // Predicated region
  $region10: #{tpu_custom_call.1} parent=0 // pred_check
    _
  $region11: #{tpu_custom_call.1} parent=0 // pred_check_branch
    %20 = sbr.rel (0) target = $region13
  $region12: #{tpu_custom_call.1} parent=0 // pred_region
    _
  $region13: #{tpu_custom_call.1} parent=0 // pred_fallthru
    _
  // Predicated region
  $region14: #{tpu_custom_call.1} parent=0 // pred_check
    _
  $region15: #{tpu_custom_call.1} parent=0 // pred_check_branch
    %22 = sbr.rel (0) target = $region17
  $region16: #{tpu_custom_call.1} parent=0 // pred_region
    _
  $region17: #{tpu_custom_call.1} parent=0 // pred_fallthru
    _
  // Predicated region
  $region18: #{tpu_custom_call.1} parent=0 // pred_check
    _
  $region19: #{tpu_custom_call.1} parent=0 // pred_check_branch
    %24 = sbr.rel (0) target = $region21
  $region20: #{tpu_custom_call.1} parent=0 // pred_region
    _
  $region21: #{tpu_custom_call.1} parent=0 // pred_fallthru
    _
  // Predicated region
  $region22: #{tpu_custom_call.1} parent=0 // pred_check
    _
  $region23: #{tpu_custom_call.1} parent=0 // pred_check_branch
    %26 = sbr.rel (0) target = $region25
  $region24: #{tpu_custom_call.1} parent=0 // pred_region
    _
  $region25: #{tpu_custom_call.1} parent=0 // pred_fallthru
    _
  // Predicated region
  $region26: #{tpu_custom_call.1} parent=0 // pred_check
    _
  $region27: #{tpu_custom_call.1} parent=0 // pred_check_branch
    %28 = sbr.rel (0) target = $region29
  $region28: #{tpu_custom_call.1} parent=0 // pred_region
    _
  $region29: #{tpu_custom_call.1} parent=0 // pred_fallthru
    _
  // Predicated region
  $region30: #{tpu_custom_call.1} parent=0 // pred_check
    _
  $region31: #{tpu_custom_call.1} parent=0 // pred_check_branch
    %30 = sbr.rel (0) target = $region33
  $region32: #{tpu_custom_call.1} parent=0 // pred_region
    _
  $region33: #{tpu_custom_call.1} parent=0 // pred_fallthru
    _
  // Predicated region
  $region34: #{tpu_custom_call.1} parent=0 // pred_check
    _
  $region35: #{tpu_custom_call.1} parent=0 // pred_check_branch
    %32 = sbr.rel (0) target = $region37
  $region36: #{tpu_custom_call.1} parent=0 // pred_region
    _
  $region37: #{tpu_custom_call.1} parent=0 // pred_fallthru
    _
  // Predicated region
  $region38: #{tpu_custom_call.1} parent=0 // pred_check
    _
  $region39: #{tpu_custom_call.1} parent=0 // pred_check_branch
    %34 = sbr.rel (0) target = $region41
  $region40: #{tpu_custom_call.1} parent=0 // pred_region
    _
  $region41: #{tpu_custom_call.1} parent=0 // pred_fallthru
    _
  %v36 = vld [vmem:[%s0] sm:$0xff]
  %v37 = vld [vmem:[%s0 + $0x8] sm:$0xff]
  %v38 = vpack.c.bf16 %v37, %v36
  %v39 = vld [vmem:[%s1] sm:$0xf]
  %v40 = vld [vmem:[%s1 + $0x4] sm:$0xf]
  %v41 = vld [vmem:[%s1 + $0x8] sm:$0xf]
  %v42 = vld [vmem:[%s1 + $0xc] sm:$0xf]
  %v43 = vld [vmem:[%s2] sm:$0xff]
  %v44 = vld [vmem:[%s2 + $0x8] sm:$0xff]
  %v45 = vld [vmem:[%s2 + $0x10] sm:$0xff]
  %v46 = vld [vmem:[%s2 + $0x18] sm:$0xff]
  %48 = vset.pattern.permute.xlu0 0
  %49 = vperm.xlu0 %48, %v43
  %v50 = vpop.permute.xlu0 %49
  %53 = vset.pattern.permute.xlu0 0
  %54 = vperm.xlu0 %53, %v44
  %v55 = vpop.permute.xlu0 %54
  %58 = vset.pattern.permute.xlu0 0
  %59 = vperm.xlu0 %58, %v45
  %v60 = vpop.permute.xlu0 %59
  %63 = vset.pattern.permute.xlu0 0
  %64 = vperm.xlu0 %63, %v46
  %v65 = vpop.permute.xlu0 %64
  %v71 = vunpack.c.l.b16 %v39
  %v72 = vunpack.c.l.b16 %v40
  %v73 = vunpack.c.l.b16 %v41
  %v74 = vunpack.c.l.b16 %v42
  %v75 = vpack.c.b16 %v72, %v71
  %v76 = vpack.c.b16 %v74, %v73
  %vm77 = vcmask 130048
  %v79 = vsel %vm77, %v75, 0
  %v82 = vsel %vm77, %v76, 0
  %84 = vmatprep.subr.bf16.mxu0 0
  %85 = vmatpush1.bf16.msra.mxu0 %v38
  %86 = vmatprep.subr.bf16.mxu0 0
  %87 = vmatpush1.bf16.msra.mxu0 0
  %88 = vmatprep.subr.bf16.mxu0 0
  %89 = vmatpush1.bf16.msra.mxu0 0
  %90 = vmatprep.subr.bf16.mxu0 0
  %91 = vmatpush1.bf16.msra.mxu0 0
  %92 = vmatprep.subr.bf16.mxu0 0
  %93 = vmatpush1.bf16.msra.mxu0 0
  %94 = vmatprep.subr.bf16.mxu0 0
  %95 = vmatpush1.bf16.msra.mxu0 0
  %96 = vmatprep.subr.bf16.mxu0 0
  %97 = vmatpush1.bf16.msra.mxu0 0
  %98 = vmatprep.subr.bf16.mxu0 0
  %99 = vmatpush1.bf16.msra.mxu0 0
  %100 = vmatprep.subr.bf16.mxu0 0
  %101 = vmatpush1.bf16.msra.mxu0 0
  %102 = vmatprep.subr.bf16.mxu0 0
  %103 = vmatpush1.bf16.msra.mxu0 0
  %104 = vmatprep.subr.bf16.mxu0 0
  %105 = vmatpush1.bf16.msra.mxu0 0
  %106 = vmatprep.subr.bf16.mxu0 0
  %107 = vmatpush1.bf16.msra.mxu0 0
  %108 = vmatprep.subr.bf16.mxu0 0
  %109 = vmatpush1.bf16.msra.mxu0 0
  %110 = vmatprep.subr.bf16.mxu0 0
  %111 = vmatpush1.bf16.msra.mxu0 0
  %112 = vmatprep.subr.bf16.mxu0 0
  %113 = vmatpush1.bf16.msra.mxu0 0
  %114 = vmatprep.subr.bf16.mxu0 0
  %115 = vmatpush1.bf16.msra.mxu0 0
  %116 = vmatprep.mubr.bf16.mxu0 0
  %117 = vmatmul.mubr.bf16.gmra.mrb[0].mxu0 %v79
  %v118 = vpop.f32.mrb[0].mxu0
  %v119 = vadd.f32 %v50, %v118
  %v120 = vpop.f32.mrb[0].mxu0
  %v121 = vpop.f32.mrb[0].mxu0
  %v122 = vadd.f32 %v55, %v121
  %v123 = vpop.f32.mrb[0].mxu0
  %124 = vmatprep.mubr.bf16.mxu0 0
  %125 = vmatmul.mubr.bf16.gmra.mrb[0].mxu0 %v82
  %v126 = vpop.f32.mrb[0].mxu0
  %v127 = vadd.f32 %v60, %v126
  %v128 = vpop.f32.mrb[0].mxu0
  %v129 = vpop.f32.mrb[0].mxu0
  %v130 = vadd.f32 %v65, %v129
  %v131 = vpop.f32.mrb[0].mxu0
  %132 = vdwg.mxu0
  %v133 = vld [vmem:[%s4] sm:$0xff]
  %v134 = vld [vmem:[%s4 + $0x8] sm:$0xff]
  %v135 = vld [vmem:[%s4 + $0x10] sm:$0xff]
  %v136 = vld [vmem:[%s4 + $0x18] sm:$0xff]
  %v137 = vld [vmem:[%s3] sm:$0xf]
  %v138 = vld [vmem:[%s3 + $0x4] sm:$0xf]
  %v139 = vld [vmem:[%s3 + $0x8] sm:$0xf]
  %v140 = vld [vmem:[%s3 + $0xc] sm:$0xf]
  %v141 = vpack.c.bf16 %v122, %v119
  %v142 = vpack.c.bf16 %v130, %v127
  %144 = vset.pattern.permute.xlu0 0
  %145 = vperm.xlu0 %144, %v133
  %v146 = vpop.permute.xlu0 %145
  %149 = vset.pattern.permute.xlu0 0
  %150 = vperm.xlu0 %149, %v134
  %v151 = vpop.permute.xlu0 %150
  %154 = vset.pattern.permute.xlu0 0
  %155 = vperm.xlu0 %154, %v135
  %v156 = vpop.permute.xlu0 %155
  %159 = vset.pattern.permute.xlu0 0
  %160 = vperm.xlu0 %159, %v136
  %v161 = vpop.permute.xlu0 %160
  %v167 = vunpack.c.l.b16 %v137
  %v168 = vunpack.c.l.b16 %v138
  %v169 = vunpack.c.l.b16 %v139
  %v170 = vunpack.c.l.b16 %v140
  %v171 = vpack.c.b16 %v168, %v167
  %v172 = vpack.c.b16 %v170, %v169
  %vm173 = vcmask 261120
  %v175 = vsel %vm173, %v171, 0
  %v178 = vsel %vm173, %v172, 0
  %180 = vmatprep.subr.bf16.mxu0 0
  %181 = vmatpush1.bf16.msra.mxu0 %v141
  %182 = vmatprep.subr.bf16.mxu0 0
  %183 = vmatpush1.bf16.msra.mxu0 %v142
  %184 = vmatprep.subr.bf16.mxu0 0
  %185 = vmatpush1.bf16.msra.mxu0 0
  %186 = vmatprep.subr.bf16.mxu0 0
  %187 = vmatpush1.bf16.msra.mxu0 0
  %188 = vmatprep.subr.bf16.mxu0 0
  %189 = vmatpush1.bf16.msra.mxu0 0
  %190 = vmatprep.subr.bf16.mxu0 0
  %191 = vmatpush1.bf16.msra.mxu0 0
  %192 = vmatprep.subr.bf16.mxu0 0
  %193 = vmatpush1.bf16.msra.mxu0 0
  %194 = vmatprep.subr.bf16.mxu0 0
  %195 = vmatpush1.bf16.msra.mxu0 0
  %196 = vmatprep.subr.bf16.mxu0 0
  %197 = vmatpush1.bf16.msra.mxu0 0
  %198 = vmatprep.subr.bf16.mxu0 0
  %199 = vmatpush1.bf16.msra.mxu0 0
  %200 = vmatprep.subr.bf16.mxu0 0
  %201 = vmatpush1.bf16.msra.mxu0 0
  %202 = vmatprep.subr.bf16.mxu0 0
  %203 = vmatpush1.bf16.msra.mxu0 0
  %204 = vmatprep.subr.bf16.mxu0 0
  %205 = vmatpush1.bf16.msra.mxu0 0
  %206 = vmatprep.subr.bf16.mxu0 0
  %207 = vmatpush1.bf16.msra.mxu0 0
  %208 = vmatprep.subr.bf16.mxu0 0
  %209 = vmatpush1.bf16.msra.mxu0 0
  %210 = vmatprep.subr.bf16.mxu0 0
  %211 = vmatpush1.bf16.msra.mxu0 0
  %212 = vmatprep.mubr.bf16.mxu0 0
  %213 = vmatmul.mubr.bf16.gmra.mrb[0].mxu0 %v175
  %v214 = vpop.f32.mrb[0].mxu0
  %v215 = vadd.f32 %v146, %v214
  %v216 = vpop.f32.mrb[0].mxu0
  %v217 = vpop.f32.mrb[0].mxu0
  %v218 = vadd.f32 %v151, %v217
  %v219 = vpop.f32.mrb[0].mxu0
  %220 = vmatprep.mubr.bf16.mxu0 0
  %221 = vmatmul.mubr.bf16.gmra.mrb[0].mxu0 %v178
  %v222 = vpop.f32.mrb[0].mxu0
  %v223 = vadd.f32 %v156, %v222
  %v224 = vpop.f32.mrb[0].mxu0
  %v225 = vpop.f32.mrb[0].mxu0
  %v226 = vadd.f32 %v161, %v225
  %v227 = vpop.f32.mrb[0].mxu0
  %228 = vdwg.mxu0
  %v229 = vadd.f32 %v119, %v215
  %v230 = vadd.f32 %v122, %v218
  %v231 = vadd.f32 %v127, %v223
  %v232 = vadd.f32 %v130, %v226
  %vm233 = vcmask 15360
  %v234 = vsel %vm233, %v229, 0.0
  %v235 = vsel %vm233, %v230, 0.0
  %v236 = vadd.f32 %v234, %v235
  %v237 = vsel %vm233, %v231, 0.0
  %v238 = vadd.f32 %v236, %v237
  %v239 = vsel %vm233, %v232, 0.0
  %v240 = vadd.f32 %v238, %v239
  %v241 = vrot.slane %v240, 4
  %v242 = vadd.f32 %v240, %v241
  %v243 = vrot.slane %v242, 2
  %v244 = vadd.f32 %v242, %v243
  %v245 = vrot.slane %v244, 1
  %v246 = vadd.f32 %v244, %v245
  %v247 = vrcp.pop 32.0
  %v248 = vmul.f32 %v246, %v247
  %v249 = vsub.f32 %v229, %v248
  %v250 = vsub.f32 %v230, %v248
  %v251 = vsub.f32 %v231, %v248
  %v252 = vsub.f32 %v232, %v248
  %v253 = vmul.f32 %v249, %v249
  %v254 = vmul.f32 %v250, %v250
  %v255 = vmul.f32 %v251, %v251
  %v256 = vmul.f32 %v252, %v252
  %v257 = vsel %vm233, %v253, 0.0
  %v258 = vsel %vm233, %v254, 0.0
  %v259 = vadd.f32 %v257, %v258
  %v260 = vsel %vm233, %v255, 0.0
  %v261 = vadd.f32 %v259, %v260
  %v262 = vsel %vm233, %v256, 0.0
  %v263 = vadd.f32 %v261, %v262
  %v264 = vrot.slane %v263, 4
  %v265 = vadd.f32 %v263, %v264
  %v266 = vrot.slane %v265, 2
  %v267 = vadd.f32 %v265, %v266
  %v268 = vrot.slane %v267, 1
  %v269 = vadd.f32 %v267, %v268
  %v270 = vmul.f32 %v269, %v247
  %v271 = vadd.f32 %v270, 1e-05
  %v272 = vrsqrt.pop %v271
  %v273 = vmul.f32 %v249, %v272
  %v274 = vmul.f32 %v250, %v272
  %v275 = vmul.f32 %v251, %v272
  %v276 = vmul.f32 %v252, %v272
  %277 = vset.pattern.permute.xlu0 1
  %278 = vperm.xlu0 %277, %v133
  %v279 = vpop.permute.xlu0 %278
  %281 = vset.pattern.permute.xlu0 1
  %282 = vperm.xlu0 %281, %v134
  %v283 = vpop.permute.xlu0 %282
  %285 = vset.pattern.permute.xlu0 1
  %286 = vperm.xlu0 %285, %v135
  %v287 = vpop.permute.xlu0 %286
  %289 = vset.pattern.permute.xlu0 1
  %290 = vperm.xlu0 %289, %v136
  %v291 = vpop.permute.xlu0 %290
  %v293 = vmul.f32 %v273, %v279
  %v294 = vmul.f32 %v274, %v283
  %v295 = vmul.f32 %v275, %v287
  %v296 = vmul.f32 %v276, %v291
  %297 = vset.pattern.permute.xlu0 2
  %298 = vperm.xlu0 %297, %v133
  %v299 = vpop.permute.xlu0 %298
  %301 = vset.pattern.permute.xlu0 2
  %302 = vperm.xlu0 %301, %v134
  %v303 = vpop.permute.xlu0 %302
  %305 = vset.pattern.permute.xlu0 2
  %306 = vperm.xlu0 %305, %v135
  %v307 = vpop.permute.xlu0 %306
  %309 = vset.pattern.permute.xlu0 2
  %310 = vperm.xlu0 %309, %v136
  %v311 = vpop.permute.xlu0 %310
  %v313 = vadd.f32 %v293, %v299
  %v314 = vadd.f32 %v294, %v303
  %v315 = vadd.f32 %v295, %v307
  %v316 = vadd.f32 %v296, %v311
  %v317 = vld [vmem:[%s5] sm:$0xf]
  %v318 = vld [vmem:[%s5 + $0x4] sm:$0xf]
  %v319 = vld [vmem:[%s5 + $0x8] sm:$0xf]
  %v320 = vld [vmem:[%s5 + $0xc] sm:$0xf]
  %v321 = vld [vmem:[%s5 + $0x10] sm:$0xf]
  %v322 = vld [vmem:[%s5 + $0x14] sm:$0xf]
  %v323 = vld [vmem:[%s5 + $0x18] sm:$0xf]
  %v324 = vld [vmem:[%s5 + $0x1c] sm:$0xf]
  %v325 = vpack.c.bf16 %v314, %v313
  %v326 = vpack.c.bf16 %v316, %v315
  %v327 = vld [vmem:[%s6] sm:$0xff]
  %v328 = vld [vmem:[%s6 + $0x8] sm:$0xff]
  %v329 = vld [vmem:[%s6 + $0x10] sm:$0xff]
  %v330 = vld [vmem:[%s6 + $0x18] sm:$0xff]
  %v331 = vld [vmem:[%s6 + $0x20] sm:$0xff]
  %v332 = vld [vmem:[%s6 + $0x28] sm:$0xff]
  %v333 = vld [vmem:[%s6 + $0x30] sm:$0xff]
  %v334 = vld [vmem:[%s6 + $0x38] sm:$0xff]
  %336 = vset.pattern.permute.xlu0 0
  %337 = vperm.xlu0 %336, %v327
  %v338 = vpop.permute.xlu0 %337
  %341 = vset.pattern.permute.xlu0 0
  %342 = vperm.xlu0 %341, %v328
  %v343 = vpop.permute.xlu0 %342
  %346 = vset.pattern.permute.xlu0 0
  %347 = vperm.xlu0 %346, %v329
  %v348 = vpop.permute.xlu0 %347
  %351 = vset.pattern.permute.xlu0 0
  %352 = vperm.xlu0 %351, %v330
  %v353 = vpop.permute.xlu0 %352
  %356 = vset.pattern.permute.xlu0 0
  %357 = vperm.xlu0 %356, %v331
  %v358 = vpop.permute.xlu0 %357
  %361 = vset.pattern.permute.xlu0 0
  %362 = vperm.xlu0 %361, %v332
  %v363 = vpop.permute.xlu0 %362
  %366 = vset.pattern.permute.xlu0 0
  %367 = vperm.xlu0 %366, %v333
  %v368 = vpop.permute.xlu0 %367
  %371 = vset.pattern.permute.xlu0 0
  %372 = vperm.xlu0 %371, %v334
  %v373 = vpop.permute.xlu0 %372
  %v383 = vunpack.c.l.b16 %v317
  %v384 = vunpack.c.l.b16 %v318
  %v385 = vunpack.c.l.b16 %v319
  %v386 = vunpack.c.l.b16 %v320
  %v387 = vunpack.c.l.b16 %v321
  %v388 = vunpack.c.l.b16 %v322
  %v389 = vunpack.c.l.b16 %v323
  %v390 = vunpack.c.l.b16 %v324
  %v391 = vpack.c.b16 %v384, %v383
  %v392 = vpack.c.b16 %v386, %v385
  %v393 = vpack.c.b16 %v388, %v387
  %v394 = vpack.c.b16 %v390, %v389
  %v396 = vsel %vm173, %v391, 0
  %v399 = vsel %vm173, %v392, 0
  %v402 = vsel %vm173, %v393, 0
  %v405 = vsel %vm173, %v394, 0
  %407 = vmatprep.subr.bf16.mxu0 0
  %408 = vmatpush1.bf16.msra.mxu0 %v325
  %409 = vmatprep.subr.bf16.mxu0 0
  %410 = vmatpush1.bf16.msra.mxu0 %v326
  %411 = vmatprep.subr.bf16.mxu0 0
  %412 = vmatpush1.bf16.msra.mxu0 0
  %413 = vmatprep.subr.bf16.mxu0 0
  %414 = vmatpush1.bf16.msra.mxu0 0
  %415 = vmatprep.subr.bf16.mxu0 0
  %416 = vmatpush1.bf16.msra.mxu0 0
  %417 = vmatprep.subr.bf16.mxu0 0
  %418 = vmatpush1.bf16.msra.mxu0 0
  %419 = vmatprep.subr.bf16.mxu0 0
  %420 = vmatpush1.bf16.msra.mxu0 0
  %421 = vmatprep.subr.bf16.mxu0 0
  %422 = vmatpush1.bf16.msra.mxu0 0
  %423 = vmatprep.subr.bf16.mxu0 0
  %424 = vmatpush1.bf16.msra.mxu0 0
  %425 = vmatprep.subr.bf16.mxu0 0
  %426 = vmatpush1.bf16.msra.mxu0 0
  %427 = vmatprep.subr.bf16.mxu0 0
  %428 = vmatpush1.bf16.msra.mxu0 0
  %429 = vmatprep.subr.bf16.mxu0 0
  %430 = vmatpush1.bf16.msra.mxu0 0
  %431 = vmatprep.subr.bf16.mxu0 0
  %432 = vmatpush1.bf16.msra.mxu0 0
  %433 = vmatprep.subr.bf16.mxu0 0
  %434 = vmatpush1.bf16.msra.mxu0 0
  %435 = vmatprep.subr.bf16.mxu0 0
  %436 = vmatpush1.bf16.msra.mxu0 0
  %437 = vmatprep.subr.bf16.mxu0 0
  %438 = vmatpush1.bf16.msra.mxu0 0
  %439 = vmatprep.mubr.bf16.mxu0 0
  %440 = vmatmul.mubr.bf16.gmra.mrb[0].mxu0 %v396
  %v441 = vpop.f32.mrb[0].mxu0
  %v442 = vadd.f32 %v338, %v441
  %v443 = vpop.f32.mrb[0].mxu0
  %v444 = vpop.f32.mrb[0].mxu0
  %v445 = vadd.f32 %v343, %v444
  %v446 = vpop.f32.mrb[0].mxu0
  %447 = vmatprep.mubr.bf16.mxu0 0
  %448 = vmatmul.mubr.bf16.gmra.mrb[0].mxu0 %v399
  %v449 = vpop.f32.mrb[0].mxu0
  %v450 = vadd.f32 %v348, %v449
  %v451 = vpop.f32.mrb[0].mxu0
  %v452 = vpop.f32.mrb[0].mxu0
  %v453 = vadd.f32 %v353, %v452
  %v454 = vpop.f32.mrb[0].mxu0
  %455 = vmatprep.mubr.bf16.mxu0 0
  %456 = vmatmul.mubr.bf16.gmra.mrb[0].mxu0 %v402
  %v457 = vpop.f32.mrb[0].mxu0
  %v458 = vadd.f32 %v358, %v457
  %v459 = vpop.f32.mrb[0].mxu0
  %v460 = vpop.f32.mrb[0].mxu0
  %v461 = vadd.f32 %v363, %v460
  %v462 = vpop.f32.mrb[0].mxu0
  %463 = vmatprep.mubr.bf16.mxu0 0
  %464 = vmatmul.mubr.bf16.gmra.mrb[0].mxu0 %v405
  %v465 = vpop.f32.mrb[0].mxu0
  %v466 = vadd.f32 %v368, %v465
  %v467 = vpop.f32.mrb[0].mxu0
  %v468 = vpop.f32.mrb[0].mxu0
  %v469 = vadd.f32 %v373, %v468
  %v470 = vpop.f32.mrb[0].mxu0
  %471 = vdwg.mxu0
  %v472 = vmax.f32 %v442, 0.0
  %v473 = vmax.f32 %v445, 0.0
  %v474 = vmax.f32 %v450, 0.0
  %v475 = vmax.f32 %v453, 0.0
  %v476 = vmax.f32 %v458, 0.0
  %v477 = vmax.f32 %v461, 0.0
  %v478 = vmax.f32 %v466, 0.0
  %v479 = vmax.f32 %v469, 0.0
  %v480 = vld [vmem:[%s7] sm:$0xf]
  %v481 = vld [vmem:[%s7 + $0x4] sm:$0xf]
  %v482 = vld [vmem:[%s7 + $0x8] sm:$0xf]
  %v483 = vld [vmem:[%s7 + $0xc] sm:$0xf]
  %v484 = vpack.c.bf16 %v473, %v472
  %v485 = vpack.c.bf16 %v475, %v474
  %v486 = vpack.c.bf16 %v477, %v476
  %v487 = vpack.c.bf16 %v479, %v478
  %488 = vset.pattern.permute.xlu0 3
  %489 = vperm.xlu0 %488, %v133
  %v490 = vpop.permute.xlu0 %489
  %492 = vset.pattern.permute.xlu0 3
  %493 = vperm.xlu0 %492, %v134
  %v494 = vpop.permute.xlu0 %493
  %496 = vset.pattern.permute.xlu0 3
  %497 = vperm.xlu0 %496, %v135
  %v498 = vpop.permute.xlu0 %497
  %500 = vset.pattern.permute.xlu0 3
  %501 = vperm.xlu0 %500, %v136
  %v502 = vpop.permute.xlu0 %501
  %v508 = vunpack.c.l.b16 %v480
  %v509 = vunpack.c.l.b16 %v481
  %v510 = vunpack.c.l.b16 %v482
  %v511 = vunpack.c.l.b16 %v483
  %v512 = vpack.c.b16 %v509, %v508
  %v513 = vpack.c.b16 %v511, %v510
  %vm514 = vcmask 523264
  %v516 = vsel %vm514, %v512, 0
  %v519 = vsel %vm514, %v513, 0
  %521 = vmatprep.subr.bf16.mxu0 0
  %522 = vmatpush1.bf16.msra.mxu0 %v484
  %523 = vmatprep.subr.bf16.mxu0 0
  %524 = vmatpush1.bf16.msra.mxu0 %v485
  %525 = vmatprep.subr.bf16.mxu0 0
  %526 = vmatpush1.bf16.msra.mxu0 %v486
  %527 = vmatprep.subr.bf16.mxu0 0
  %528 = vmatpush1.bf16.msra.mxu0 %v487
  %529 = vmatprep.subr.bf16.mxu0 0
  %530 = vmatpush1.bf16.msra.mxu0 0
  %531 = vmatprep.subr.bf16.mxu0 0
  %532 = vmatpush1.bf16.msra.mxu0 0
  %533 = vmatprep.subr.bf16.mxu0 0
  %534 = vmatpush1.bf16.msra.mxu0 0
  %535 = vmatprep.subr.bf16.mxu0 0
  %536 = vmatpush1.bf16.msra.mxu0 0
  %537 = vmatprep.subr.bf16.mxu0 0
  %538 = vmatpush1.bf16.msra.mxu0 0
  %539 = vmatprep.subr.bf16.mxu0 0
  %540 = vmatpush1.bf16.msra.mxu0 0
  %541 = vmatprep.subr.bf16.mxu0 0
  %542 = vmatpush1.bf16.msra.mxu0 0
  %543 = vmatprep.subr.bf16.mxu0 0
  %544 = vmatpush1.bf16.msra.mxu0 0
  %545 = vmatprep.subr.bf16.mxu0 0
  %546 = vmatpush1.bf16.msra.mxu0 0
  %547 = vmatprep.subr.bf16.mxu0 0
  %548 = vmatpush1.bf16.msra.mxu0 0
  %549 = vmatprep.subr.bf16.mxu0 0
  %550 = vmatpush1.bf16.msra.mxu0 0
  %551 = vmatprep.subr.bf16.mxu0 0
  %552 = vmatpush1.bf16.msra.mxu0 0
  %553 = vmatprep.mubr.bf16.mxu0 0
  %554 = vmatmul.mubr.bf16.gmra.mrb[0].mxu0 %v516
  %v555 = vpop.f32.mrb[0].mxu0
  %v556 = vadd.f32 %v490, %v555
  %v557 = vpop.f32.mrb[0].mxu0
  %v558 = vpop.f32.mrb[0].mxu0
  %v559 = vadd.f32 %v494, %v558
  %v560 = vpop.f32.mrb[0].mxu0
  %561 = vmatprep.mubr.bf16.mxu0 0
  %562 = vmatmul.mubr.bf16.gmra.mrb[0].mxu0 %v519
  %v563 = vpop.f32.mrb[0].mxu0
  %v564 = vadd.f32 %v498, %v563
  %v565 = vpop.f32.mrb[0].mxu0
  %v566 = vpop.f32.mrb[0].mxu0
  %v567 = vadd.f32 %v502, %v566
  %v568 = vpop.f32.mrb[0].mxu0
  %569 = vdwg.mxu0
  %v570 = vadd.f32 %v313, %v556
  %v571 = vadd.f32 %v314, %v559
  %v572 = vadd.f32 %v315, %v564
  %v573 = vadd.f32 %v316, %v567
  %v574 = vsel %vm233, %v570, 0.0
  %v575 = vsel %vm233, %v571, 0.0
  %v576 = vadd.f32 %v574, %v575
  %v577 = vsel %vm233, %v572, 0.0
  %v578 = vadd.f32 %v576, %v577
  %v579 = vsel %vm233, %v573, 0.0
  %v580 = vadd.f32 %v578, %v579
  %v581 = vrot.slane %v580, 4
  %v582 = vadd.f32 %v580, %v581
  %v583 = vrot.slane %v582, 2
  %v584 = vadd.f32 %v582, %v583
  %v585 = vrot.slane %v584, 1
  %v586 = vadd.f32 %v584, %v585
  %v587 = vmul.f32 %v586, %v247
  %v588 = vsub.f32 %v570, %v587
  %v589 = vsub.f32 %v571, %v587
  %v590 = vsub.f32 %v572, %v587
  %v591 = vsub.f32 %v573, %v587
  %v592 = vmul.f32 %v588, %v588
  %v593 = vmul.f32 %v589, %v589
  %v594 = vmul.f32 %v590, %v590
  %v595 = vmul.f32 %v591, %v591
  %v596 = vsel %vm233, %v592, 0.0
  %v597 = vsel %vm233, %v593, 0.0
  %v598 = vadd.f32 %v596, %v597
  %v599 = vsel %vm233, %v594, 0.0
  %v600 = vadd.f32 %v598, %v599
  %v601 = vsel %vm233, %v595, 0.0
  %v602 = vadd.f32 %v600, %v601
  %v603 = vrot.slane %v602, 4
  %v604 = vadd.f32 %v602, %v603
  %v605 = vrot.slane %v604, 2
  %v606 = vadd.f32 %v604, %v605
  %v607 = vrot.slane %v606, 1
  %v608 = vadd.f32 %v606, %v607
  %v609 = vmul.f32 %v608, %v247
  %v610 = vadd.f32 %v609, 1e-05
  %v611 = vrsqrt.pop %v610
  %v612 = vmul.f32 %v588, %v611
  %v613 = vmul.f32 %v589, %v611
  %v614 = vmul.f32 %v590, %v611
  %v615 = vmul.f32 %v591, %v611
  %616 = vset.pattern.permute.xlu0 4
  %617 = vperm.xlu0 %616, %v133
  %v618 = vpop.permute.xlu0 %617
  %620 = vset.pattern.permute.xlu0 4
  %621 = vperm.xlu0 %620, %v134
  %v622 = vpop.permute.xlu0 %621
  %624 = vset.pattern.permute.xlu0 4
  %625 = vperm.xlu0 %624, %v135
  %v626 = vpop.permute.xlu0 %625
  %628 = vset.pattern.permute.xlu0 4
  %629 = vperm.xlu0 %628, %v136
  %v630 = vpop.permute.xlu0 %629
  %v632 = vmul.f32 %v612, %v618
  %v633 = vmul.f32 %v613, %v622
  %v634 = vmul.f32 %v614, %v626
  %v635 = vmul.f32 %v615, %v630
  %636 = vset.pattern.permute.xlu0 5
  %637 = vperm.xlu0 %636, %v133
  %v638 = vpop.permute.xlu0 %637
  %640 = vset.pattern.permute.xlu0 5
  %641 = vperm.xlu0 %640, %v134
  %v642 = vpop.permute.xlu0 %641
  %644 = vset.pattern.permute.xlu0 5
  %645 = vperm.xlu0 %644, %v135
  %v646 = vpop.permute.xlu0 %645
  %648 = vset.pattern.permute.xlu0 5
  %649 = vperm.xlu0 %648, %v136
  %v650 = vpop.permute.xlu0 %649
  %v652 = vadd.f32 %v632, %v638
  %v653 = vadd.f32 %v633, %v642
  %v654 = vadd.f32 %v634, %v646
  %v655 = vadd.f32 %v635, %v650
  %s656 = scalar_lea.vmem %s4, 32
  %v657 = vld [vmem:[%s656] sm:$0xff]
  %v658 = vld [vmem:[%s656 + $0x8] sm:$0xff]
  %v659 = vld [vmem:[%s656 + $0x10] sm:$0xff]
  %v660 = vld [vmem:[%s656 + $0x18] sm:$0xff]
  %s661 = scalar_lea.vmem %s3, 16
  %v662 = vld [vmem:[%s661] sm:$0xf]
  %v663 = vld [vmem:[%s661 + $0x4] sm:$0xf]
  %v664 = vld [vmem:[%s661 + $0x8] sm:$0xf]
  %v665 = vld [vmem:[%s661 + $0xc] sm:$0xf]
  %v666 = vpack.c.bf16 %v653, %v652
  %v667 = vpack.c.bf16 %v655, %v654
  %669 = vset.pattern.permute.xlu0 0
  %670 = vperm.xlu0 %669, %v657
  %v671 = vpop.permute.xlu0 %670
  %674 = vset.pattern.permute.xlu0 0
  %675 = vperm.xlu0 %674, %v658
  %v676 = vpop.permute.xlu0 %675
  %679 = vset.pattern.permute.xlu0 0
  %680 = vperm.xlu0 %679, %v659
  %v681 = vpop.permute.xlu0 %680
  %684 = vset.pattern.permute.xlu0 0
  %685 = vperm.xlu0 %684, %v660
  %v686 = vpop.permute.xlu0 %685
  %v692 = vunpack.c.l.b16 %v662
  %v693 = vunpack.c.l.b16 %v663
  %v694 = vunpack.c.l.b16 %v664
  %v695 = vunpack.c.l.b16 %v665
  %v696 = vpack.c.b16 %v693, %v692
  %v697 = vpack.c.b16 %v695, %v694
  %v699 = vsel %vm173, %v696, 0
  %v702 = vsel %vm173, %v697, 0
  %704 = vmatprep.subr.bf16.mxu0 0
  %705 = vmatpush1.bf16.msra.mxu0 %v666
  %706 = vmatprep.subr.bf16.mxu0 0
  %707 = vmatpush1.bf16.msra.mxu0 %v667
  %708 = vmatprep.subr.bf16.mxu0 0
  %709 = vmatpush1.bf16.msra.mxu0 0
  %710 = vmatprep.subr.bf16.mxu0 0
  %711 = vmatpush1.bf16.msra.mxu0 0
  %712 = vmatprep.subr.bf16.mxu0 0
  %713 = vmatpush1.bf16.msra.mxu0 0
  %714 = vmatprep.subr.bf16.mxu0 0
  %715 = vmatpush1.bf16.msra.mxu0 0
  %716 = vmatprep.subr.bf16.mxu0 0
  %717 = vmatpush1.bf16.msra.mxu0 0
  %718 = vmatprep.subr.bf16.mxu0 0
  %719 = vmatpush1.bf16.msra.mxu0 0
  %720 = vmatprep.subr.bf16.mxu0 0
  %721 = vmatpush1.bf16.msra.mxu0 0
  %722 = vmatprep.subr.bf16.mxu0 0
  %723 = vmatpush1.bf16.msra.mxu0 0
  %724 = vmatprep.subr.bf16.mxu0 0
  %725 = vmatpush1.bf16.msra.mxu0 0
  %726 = vmatprep.subr.bf16.mxu0 0
  %727 = vmatpush1.bf16.msra.mxu0 0
  %728 = vmatprep.subr.bf16.mxu0 0
  %729 = vmatpush1.bf16.msra.mxu0 0
  %730 = vmatprep.subr.bf16.mxu0 0
  %731 = vmatpush1.bf16.msra.mxu0 0
  %732 = vmatprep.subr.bf16.mxu0 0
  %733 = vmatpush1.bf16.msra.mxu0 0
  %734 = vmatprep.subr.bf16.mxu0 0
  %735 = vmatpush1.bf16.msra.mxu0 0
  %736 = vmatprep.mubr.bf16.mxu0 0
  %737 = vmatmul.mubr.bf16.gmra.mrb[0].mxu0 %v699
  %v738 = vpop.f32.mrb[0].mxu0
  %v739 = vadd.f32 %v671, %v738
  %v740 = vpop.f32.mrb[0].mxu0
  %v741 = vpop.f32.mrb[0].mxu0
  %v742 = vadd.f32 %v676, %v741
  %v743 = vpop.f32.mrb[0].mxu0
  %744 = vmatprep.mubr.bf16.mxu0 0
  %745 = vmatmul.mubr.bf16.gmra.mrb[0].mxu0 %v702
  %v746 = vpop.f32.mrb[0].mxu0
  %v747 = vadd.f32 %v681, %v746
  %v748 = vpop.f32.mrb[0].mxu0
  %v749 = vpop.f32.mrb[0].mxu0
  %v750 = vadd.f32 %v686, %v749
  %v751 = vpop.f32.mrb[0].mxu0
  %752 = vdwg.mxu0
  %v753 = vadd.f32 %v652, %v739
  %v754 = vadd.f32 %v653, %v742
  %v755 = vadd.f32 %v654, %v747
  %v756 = vadd.f32 %v655, %v750
  %v757 = vsel %vm233, %v753, 0.0
  %v758 = vsel %vm233, %v754, 0.0
  %v759 = vadd.f32 %v757, %v758
  %v760 = vsel %vm233, %v755, 0.0
  %v761 = vadd.f32 %v759, %v760
  %v762 = vsel %vm233, %v756, 0.0
  %v763 = vadd.f32 %v761, %v762
  %v764 = vrot.slane %v763, 4
  %v765 = vadd.f32 %v763, %v764
  %v766 = vrot.slane %v765, 2
  %v767 = vadd.f32 %v765, %v766
  %v768 = vrot.slane %v767, 1
  %v769 = vadd.f32 %v767, %v768
  %v770 = vmul.f32 %v769, %v247
  %v771 = vsub.f32 %v753, %v770
  %v772 = vsub.f32 %v754, %v770
  %v773 = vsub.f32 %v755, %v770
  %v774 = vsub.f32 %v756, %v770
  %v775 = vmul.f32 %v771, %v771
  %v776 = vmul.f32 %v772, %v772
  %v777 = vmul.f32 %v773, %v773
  %v778 = vmul.f32 %v774, %v774
  %v779 = vsel %vm233, %v775, 0.0
  %v780 = vsel %vm233, %v776, 0.0
  %v781 = vadd.f32 %v779, %v780
  %v782 = vsel %vm233, %v777, 0.0
  %v783 = vadd.f32 %v781, %v782
  %v784 = vsel %vm233, %v778, 0.0
  %v785 = vadd.f32 %v783, %v784
  %v786 = vrot.slane %v785, 4
  %v787 = vadd.f32 %v785, %v786
  %v788 = vrot.slane %v787, 2
  %v789 = vadd.f32 %v787, %v788
  %v790 = vrot.slane %v789, 1
  %v791 = vadd.f32 %v789, %v790
  %v792 = vmul.f32 %v791, %v247
  %v793 = vadd.f32 %v792, 1e-05
  %v794 = vrsqrt.pop %v793
  %v795 = vmul.f32 %v771, %v794
  %v796 = vmul.f32 %v772, %v794
  %v797 = vmul.f32 %v773, %v794
  %v798 = vmul.f32 %v774, %v794
  %799 = vset.pattern.permute.xlu0 1
  %800 = vperm.xlu0 %799, %v657
  %v801 = vpop.permute.xlu0 %800
  %803 = vset.pattern.permute.xlu0 1
  %804 = vperm.xlu0 %803, %v658
  %v805 = vpop.permute.xlu0 %804
  %807 = vset.pattern.permute.xlu0 1
  %808 = vperm.xlu0 %807, %v659
  %v809 = vpop.permute.xlu0 %808
  %811 = vset.pattern.permute.xlu0 1
  %812 = vperm.xlu0 %811, %v660
  %v813 = vpop.permute.xlu0 %812
  %v815 = vmul.f32 %v795, %v801
  %v816 = vmul.f32 %v796, %v805
  %v817 = vmul.f32 %v797, %v809
  %v818 = vmul.f32 %v798, %v813
  %819 = vset.pattern.permute.xlu0 2
  %820 = vperm.xlu0 %819, %v657
  %v821 = vpop.permute.xlu0 %820
  %823 = vset.pattern.permute.xlu0 2
  %824 = vperm.xlu0 %823, %v658
  %v825 = vpop.permute.xlu0 %824
  %827 = vset.pattern.permute.xlu0 2
  %828 = vperm.xlu0 %827, %v659
  %v829 = vpop.permute.xlu0 %828
  %831 = vset.pattern.permute.xlu0 2
  %832 = vperm.xlu0 %831, %v660
  %v833 = vpop.permute.xlu0 %832
  %v835 = vadd.f32 %v815, %v821
  %v836 = vadd.f32 %v816, %v825
  %v837 = vadd.f32 %v817, %v829
  %v838 = vadd.f32 %v818, %v833
  %s839 = scalar_lea.vmem %s5, 32
  %v840 = vld [vmem:[%s839] sm:$0xf]
  %v841 = vld [vmem:[%s839 + $0x4] sm:$0xf]
  %v842 = vld [vmem:[%s839 + $0x8] sm:$0xf]
  %v843 = vld [vmem:[%s839 + $0xc] sm:$0xf]
  %v844 = vld [vmem:[%s839 + $0x10] sm:$0xf]
  %v845 = vld [vmem:[%s839 + $0x14] sm:$0xf]
  %v846 = vld [vmem:[%s839 + $0x18] sm:$0xf]
  %v847 = vld [vmem:[%s839 + $0x1c] sm:$0xf]
  %v848 = vpack.c.bf16 %v836, %v835
  %v849 = vpack.c.bf16 %v838, %v837
  %s850 = scalar_lea.vmem %s6, 64
  %v851 = vld [vmem:[%s850] sm:$0xff]
  %v852 = vld [vmem:[%s850 + $0x8] sm:$0xff]
  %v853 = vld [vmem:[%s850 + $0x10] sm:$0xff]
  %v854 = vld [vmem:[%s850 + $0x18] sm:$0xff]
  %v855 = vld [vmem:[%s850 + $0x20] sm:$0xff]
  %v856 = vld [vmem:[%s850 + $0x28] sm:$0xff]
  %v857 = vld [vmem:[%s850 + $0x30] sm:$0xff]
  %v858 = vld [vmem:[%s850 + $0x38] sm:$0xff]
  %860 = vset.pattern.permute.xlu0 0
  %861 = vperm.xlu0 %860, %v851
  %v862 = vpop.permute.xlu0 %861
  %865 = vset.pattern.permute.xlu0 0
  %866 = vperm.xlu0 %865, %v852
  %v867 = vpop.permute.xlu0 %866
  %870 = vset.pattern.permute.xlu0 0
  %871 = vperm.xlu0 %870, %v853
  %v872 = vpop.permute.xlu0 %871
  %875 = vset.pattern.permute.xlu0 0
  %876 = vperm.xlu0 %875, %v854
  %v877 = vpop.permute.xlu0 %876
  %880 = vset.pattern.permute.xlu0 0
  %881 = vperm.xlu0 %880, %v855
  %v882 = vpop.permute.xlu0 %881
  %885 = vset.pattern.permute.xlu0 0
  %886 = vperm.xlu0 %885, %v856
  %v887 = vpop.permute.xlu0 %886
  %890 = vset.pattern.permute.xlu0 0
  %891 = vperm.xlu0 %890, %v857
  %v892 = vpop.permute.xlu0 %891
  %895 = vset.pattern.permute.xlu0 0
  %896 = vperm.xlu0 %895, %v858
  %v897 = vpop.permute.xlu0 %896
  %v907 = vunpack.c.l.b16 %v840
  %v908 = vunpack.c.l.b16 %v841
  %v909 = vunpack.c.l.b16 %v842
  %v910 = vunpack.c.l.b16 %v843
  %v911 = vunpack.c.l.b16 %v844
  %v912 = vunpack.c.l.b16 %v845
  %v913 = vunpack.c.l.b16 %v846
  %v914 = vunpack.c.l.b16 %v847
  %v915 = vpack.c.b16 %v908, %v907
  %v916 = vpack.c.b16 %v910, %v909
  %v917 = vpack.c.b16 %v912, %v911
  %v918 = vpack.c.b16 %v914, %v913
  %v920 = vsel %vm173, %v915, 0
  %v923 = vsel %vm173, %v916, 0
  %v926 = vsel %vm173, %v917, 0
  %v929 = vsel %vm173, %v918, 0
  %931 = vmatprep.subr.bf16.mxu0 0
  %932 = vmatpush1.bf16.msra.mxu0 %v848
  %933 = vmatprep.subr.bf16.mxu0 0
  %934 = vmatpush1.bf16.msra.mxu0 %v849
  %935 = vmatprep.subr.bf16.mxu0 0
  %936 = vmatpush1.bf16.msra.mxu0 0
  %937 = vmatprep.subr.bf16.mxu0 0
  %938 = vmatpush1.bf16.msra.mxu0 0
  %939 = vmatprep.subr.bf16.mxu0 0
  %940 = vmatpush1.bf16.msra.mxu0 0
  %941 = vmatprep.subr.bf16.mxu0 0
  %942 = vmatpush1.bf16.msra.mxu0 0
  %943 = vmatprep.subr.bf16.mxu0 0
  %944 = vmatpush1.bf16.msra.mxu0 0
  %945 = vmatprep.subr.bf16.mxu0 0
  %946 = vmatpush1.bf16.msra.mxu0 0
  %947 = vmatprep.subr.bf16.mxu0 0
  %948 = vmatpush1.bf16.msra.mxu0 0
  %949 = vmatprep.subr.bf16.mxu0 0
  %950 = vmatpush1.bf16.msra.mxu0 0
  %951 = vmatprep.subr.bf16.mxu0 0
  %952 = vmatpush1.bf16.msra.mxu0 0
  %953 = vmatprep.subr.bf16.mxu0 0
  %954 = vmatpush1.bf16.msra.mxu0 0
  %955 = vmatprep.subr.bf16.mxu0 0
  %956 = vmatpush1.bf16.msra.mxu0 0
  %957 = vmatprep.subr.bf16.mxu0 0
  %958 = vmatpush1.bf16.msra.mxu0 0
  %959 = vmatprep.subr.bf16.mxu0 0
  %960 = vmatpush1.bf16.msra.mxu0 0
  %961 = vmatprep.subr.bf16.mxu0 0
  %962 = vmatpush1.bf16.msra.mxu0 0
  %963 = vmatprep.mubr.bf16.mxu0 0
  %964 = vmatmul.mubr.bf16.gmra.mrb[0].mxu0 %v920
  %v965 = vpop.f32.mrb[0].mxu0
  %v966 = vadd.f32 %v862, %v965
  %v967 = vpop.f32.mrb[0].mxu0
  %v968 = vpop.f32.mrb[0].mxu0
  %v969 = vadd.f32 %v867, %v968
  %v970 = vpop.f32.mrb[0].mxu0
  %971 = vmatprep.mubr.bf16.mxu0 0
  %972 = vmatmul.mubr.bf16.gmra.mrb[0].mxu0 %v923
  %v973 = vpop.f32.mrb[0].mxu0
  %v974 = vadd.f32 %v872, %v973
  %v975 = vpop.f32.mrb[0].mxu0
  %v976 = vpop.f32.mrb[0].mxu0
  %v977 = vadd.f32 %v877, %v976
  %v978 = vpop.f32.mrb[0].mxu0
  %979 = vmatprep.mubr.bf16.mxu0 0
  %980 = vmatmul.mubr.bf16.gmra.mrb[0].mxu0 %v926
  %v981 = vpop.f32.mrb[0].mxu0
  %v982 = vadd.f32 %v882, %v981
  %v983 = vpop.f32.mrb[0].mxu0
  %v984 = vpop.f32.mrb[0].mxu0
  %v985 = vadd.f32 %v887, %v984
  %v986 = vpop.f32.mrb[0].mxu0
  %987 = vmatprep.mubr.bf16.mxu0 0
  %988 = vmatmul.mubr.bf16.gmra.mrb[0].mxu0 %v929
  %v989 = vpop.f32.mrb[0].mxu0
  %v990 = vadd.f32 %v892, %v989
  %v991 = vpop.f32.mrb[0].mxu0
  %v992 = vpop.f32.mrb[0].mxu0
  %v993 = vadd.f32 %v897, %v992
  %v994 = vpop.f32.mrb[0].mxu0
  %995 = vdwg.mxu0
  %v996 = vmax.f32 %v966, 0.0
  %v997 = vmax.f32 %v969, 0.0
  %v998 = vmax.f32 %v974, 0.0
  %v999 = vmax.f32 %v977, 0.0
  %v1000 = vmax.f32 %v982, 0.0
  %v1001 = vmax.f32 %v985, 0.0
  %v1002 = vmax.f32 %v990, 0.0
  %v1003 = vmax.f32 %v993, 0.0
  %s1004 = scalar_lea.vmem %s7, 16
  %v1005 = vld [vmem:[%s1004] sm:$0xf]
  %v1006 = vld [vmem:[%s1004 + $0x4] sm:$0xf]
  %v1007 = vld [vmem:[%s1004 + $0x8] sm:$0xf]
  %v1008 = vld [vmem:[%s1004 + $0xc] sm:$0xf]
  %v1009 = vpack.c.bf16 %v997, %v996
  %v1010 = vpack.c.bf16 %v999, %v998
  %v1011 = vpack.c.bf16 %v1001, %v1000
  %v1012 = vpack.c.bf16 %v1003, %v1002
  %1013 = vset.pattern.permute.xlu0 3
  %1014 = vperm.xlu0 %1013, %v657
  %v1015 = vpop.permute.xlu0 %1014
  %1017 = vset.pattern.permute.xlu0 3
  %1018 = vperm.xlu0 %1017, %v658
  %v1019 = vpop.permute.xlu0 %1018
  %1021 = vset.pattern.permute.xlu0 3
  %1022 = vperm.xlu0 %1021, %v659
  %v1023 = vpop.permute.xlu0 %1022
  %1025 = vset.pattern.permute.xlu0 3
  %1026 = vperm.xlu0 %1025, %v660
  %v1027 = vpop.permute.xlu0 %1026
  %v1033 = vunpack.c.l.b16 %v1005
  %v1034 = vunpack.c.l.b16 %v1006
  %v1035 = vunpack.c.l.b16 %v1007
  %v1036 = vunpack.c.l.b16 %v1008
  %v1037 = vpack.c.b16 %v1034, %v1033
  %v1038 = vpack.c.b16 %v1036, %v1035
  %v1040 = vsel %vm514, %v1037, 0
  %v1043 = vsel %vm514, %v1038, 0
  %1045 = vmatprep.subr.bf16.mxu0 0
  %1046 = vmatpush1.bf16.msra.mxu0 %v1009
  %1047 = vmatprep.subr.bf16.mxu0 0
  %1048 = vmatpush1.bf16.msra.mxu0 %v1010
  %1049 = vmatprep.subr.bf16.mxu0 0
  %1050 = vmatpush1.bf16.msra.mxu0 %v1011
  %1051 = vmatprep.subr.bf16.mxu0 0
  %1052 = vmatpush1.bf16.msra.mxu0 %v1012
  %1053 = vmatprep.subr.bf16.mxu0 0
  %1054 = vmatpush1.bf16.msra.mxu0 0
  %1055 = vmatprep.subr.bf16.mxu0 0
  %1056 = vmatpush1.bf16.msra.mxu0 0
  %1057 = vmatprep.subr.bf16.mxu0 0
  %1058 = vmatpush1.bf16.msra.mxu0 0
  %1059 = vmatprep.subr.bf16.mxu0 0
  %1060 = vmatpush1.bf16.msra.mxu0 0
  %1061 = vmatprep.subr.bf16.mxu0 0
  %1062 = vmatpush1.bf16.msra.mxu0 0
  %1063 = vmatprep.subr.bf16.mxu0 0
  %1064 = vmatpush1.bf16.msra.mxu0 0
  %1065 = vmatprep.subr.bf16.mxu0 0
  %1066 = vmatpush1.bf16.msra.mxu0 0
  %1067 = vmatprep.subr.bf16.mxu0 0
  %1068 = vmatpush1.bf16.msra.mxu0 0
  %1069 = vmatprep.subr.bf16.mxu0 0
  %1070 = vmatpush1.bf16.msra.mxu0 0
  %1071 = vmatprep.subr.bf16.mxu0 0
  %1072 = vmatpush1.bf16.msra.mxu0 0
  %1073 = vmatprep.subr.bf16.mxu0 0
  %1074 = vmatpush1.bf16.msra.mxu0 0
  %1075 = vmatprep.subr.bf16.mxu0 0
  %1076 = vmatpush1.bf16.msra.mxu0 0
  %1077 = vmatprep.mubr.bf16.mxu0 0
  %1078 = vmatmul.mubr.bf16.gmra.mrb[0].mxu0 %v1040
  %v1079 = vpop.f32.mrb[0].mxu0
  %v1080 = vadd.f32 %v1015, %v1079
  %v1081 = vpop.f32.mrb[0].mxu0
  %v1082 = vpop.f32.mrb[0].mxu0
  %v1083 = vadd.f32 %v1019, %v1082
  %v1084 = vpop.f32.mrb[0].mxu0
  %1085 = vmatprep.mubr.bf16.mxu0 0
  %1086 = vmatmul.mubr.bf16.gmra.mrb[0].mxu0 %v1043
  %v1087 = vpop.f32.mrb[0].mxu0
  %v1088 = vadd.f32 %v1023, %v1087
  %v1089 = vpop.f32.mrb[0].mxu0
  %v1090 = vpop.f32.mrb[0].mxu0
  %v1091 = vadd.f32 %v1027, %v1090
  %v1092 = vpop.f32.mrb[0].mxu0
  %1093 = vdwg.mxu0
  %v1094 = vadd.f32 %v835, %v1080
  %v1095 = vadd.f32 %v836, %v1083
  %v1096 = vadd.f32 %v837, %v1088
  %v1097 = vadd.f32 %v838, %v1091
  %v1098 = vsel %vm233, %v1094, 0.0
  %v1099 = vsel %vm233, %v1095, 0.0
  %v1100 = vadd.f32 %v1098, %v1099
  %v1101 = vsel %vm233, %v1096, 0.0
  %v1102 = vadd.f32 %v1100, %v1101
  %v1103 = vsel %vm233, %v1097, 0.0
  %v1104 = vadd.f32 %v1102, %v1103
  %v1105 = vrot.slane %v1104, 4
  %v1106 = vadd.f32 %v1104, %v1105
  %v1107 = vrot.slane %v1106, 2
  %v1108 = vadd.f32 %v1106, %v1107
  %v1109 = vrot.slane %v1108, 1
  %v1110 = vadd.f32 %v1108, %v1109
  %v1111 = vmul.f32 %v1110, %v247
  %v1112 = vsub.f32 %v1094, %v1111
  %v1113 = vsub.f32 %v1095, %v1111
  %v1114 = vsub.f32 %v1096, %v1111
  %v1115 = vsub.f32 %v1097, %v1111
  %v1116 = vmul.f32 %v1112, %v1112
  %v1117 = vmul.f32 %v1113, %v1113
  %v1118 = vmul.f32 %v1114, %v1114
  %v1119 = vmul.f32 %v1115, %v1115
  %v1120 = vsel %vm233, %v1116, 0.0
  %v1121 = vsel %vm233, %v1117, 0.0
  %v1122 = vadd.f32 %v1120, %v1121
  %v1123 = vsel %vm233, %v1118, 0.0
  %v1124 = vadd.f32 %v1122, %v1123
  %v1125 = vsel %vm233, %v1119, 0.0
  %v1126 = vadd.f32 %v1124, %v1125
  %v1127 = vrot.slane %v1126, 4
  %v1128 = vadd.f32 %v1126, %v1127
  %v1129 = vrot.slane %v1128, 2
  %v1130 = vadd.f32 %v1128, %v1129
  %v1131 = vrot.slane %v1130, 1
  %v1132 = vadd.f32 %v1130, %v1131
  %v1133 = vmul.f32 %v1132, %v247
  %v1134 = vadd.f32 %v1133, 1e-05
  %v1135 = vrsqrt.pop %v1134
  %v1136 = vmul.f32 %v1112, %v1135
  %v1137 = vmul.f32 %v1113, %v1135
  %v1138 = vmul.f32 %v1114, %v1135
  %v1139 = vmul.f32 %v1115, %v1135
  %1140 = vset.pattern.permute.xlu0 4
  %1141 = vperm.xlu0 %1140, %v657
  %v1142 = vpop.permute.xlu0 %1141
  %1144 = vset.pattern.permute.xlu0 4
  %1145 = vperm.xlu0 %1144, %v658
  %v1146 = vpop.permute.xlu0 %1145
  %1148 = vset.pattern.permute.xlu0 4
  %1149 = vperm.xlu0 %1148, %v659
  %v1150 = vpop.permute.xlu0 %1149
  %1152 = vset.pattern.permute.xlu0 4
  %1153 = vperm.xlu0 %1152, %v660
  %v1154 = vpop.permute.xlu0 %1153
  %v1156 = vmul.f32 %v1136, %v1142
  %v1157 = vmul.f32 %v1137, %v1146
  %v1158 = vmul.f32 %v1138, %v1150
  %v1159 = vmul.f32 %v1139, %v1154
  %1160 = vset.pattern.permute.xlu0 5
  %1161 = vperm.xlu0 %1160, %v657
  %v1162 = vpop.permute.xlu0 %1161
  %1164 = vset.pattern.permute.xlu0 5
  %1165 = vperm.xlu0 %1164, %v658
  %v1166 = vpop.permute.xlu0 %1165
  %1168 = vset.pattern.permute.xlu0 5
  %1169 = vperm.xlu0 %1168, %v659
  %v1170 = vpop.permute.xlu0 %1169
  %1172 = vset.pattern.permute.xlu0 5
  %1173 = vperm.xlu0 %1172, %v660
  %v1174 = vpop.permute.xlu0 %1173
  %v1176 = vadd.f32 %v1156, %v1162
  %v1177 = vadd.f32 %v1157, %v1166
  %v1178 = vadd.f32 %v1158, %v1170
  %v1179 = vadd.f32 %v1159, %v1174
  %v1180 = vld [vmem:[%s8] sm:$0x3]
  %v1181 = vpack.c.bf16 %v1177, %v1176
  %v1182 = vpack.c.bf16 %v1179, %v1178
  %v1183 = vld [vmem:[%s9] sm:$0xf]
  %1185 = vset.pattern.permute.xlu0 0
  %1186 = vperm.xlu0 %1185, %v1183
  %v1187 = vpop.permute.xlu0 %1186
  %v1190 = vsel %vm173, %v1180, 0
  %1192 = vmatprep.subr.bf16.mxu0 0
  %1193 = vmatpush1.bf16.msra.mxu0 %v1181
  %1194 = vmatprep.subr.bf16.mxu0 0
  %1195 = vmatpush1.bf16.msra.mxu0 %v1182
  %1196 = vmatprep.subr.bf16.mxu0 0
  %1197 = vmatpush1.bf16.msra.mxu0 0
  %1198 = vmatprep.subr.bf16.mxu0 0
  %1199 = vmatpush1.bf16.msra.mxu0 0
  %1200 = vmatprep.subr.bf16.mxu0 0
  %1201 = vmatpush1.bf16.msra.mxu0 0
  %1202 = vmatprep.subr.bf16.mxu0 0
  %1203 = vmatpush1.bf16.msra.mxu0 0
  %1204 = vmatprep.subr.bf16.mxu0 0
  %1205 = vmatpush1.bf16.msra.mxu0 0
  %1206 = vmatprep.subr.bf16.mxu0 0
  %1207 = vmatpush1.bf16.msra.mxu0 0
  %1208 = vmatprep.subr.bf16.mxu0 0
  %1209 = vmatpush1.bf16.msra.mxu0 0
  %1210 = vmatprep.subr.bf16.mxu0 0
  %1211 = vmatpush1.bf16.msra.mxu0 0
  %1212 = vmatprep.subr.bf16.mxu0 0
  %1213 = vmatpush1.bf16.msra.mxu0 0
  %1214 = vmatprep.subr.bf16.mxu0 0
  %1215 = vmatpush1.bf16.msra.mxu0 0
  %1216 = vmatprep.subr.bf16.mxu0 0
  %1217 = vmatpush1.bf16.msra.mxu0 0
  %1218 = vmatprep.subr.bf16.mxu0 0
  %1219 = vmatpush1.bf16.msra.mxu0 0
  %1220 = vmatprep.subr.bf16.mxu0 0
  %1221 = vmatpush1.bf16.msra.mxu0 0
  %1222 = vmatprep.subr.bf16.mxu0 0
  %1223 = vmatpush1.bf16.msra.mxu0 0
  %1224 = vmatprep.mubr.bf16.mxu0 0
  %1225 = vmatmul.mubr.bf16.gmra.mrb[0].mxu0 %v1190
  %v1226 = vpop.f32.mrb[0].mxu0
  %v1227 = vadd.f32 %v1187, %v1226
  %v1228 = vpop.f32.mrb[0].mxu0
  %v1229 = vpop.f32.mrb[0].mxu0
  %v1230 = vpop.f32.mrb[0].mxu0
  %1231 = vdwg.mxu0
  %vm1232 = vcmask 11264
  %1233 = vst.msk [vmem:[%s10] sm:$0xf] %vm1232, %v1227
  // Predicated region
  $region42: #{tpu_custom_call.1} parent=0 // pred_check
    _
  $region43: #{tpu_custom_call.1} parent=0 // pred_check_branch
    %1235 = sbr.rel (0) target = $region45
  $region44: #{tpu_custom_call.1} parent=0 // pred_region
    _
  $region45: #{tpu_custom_call.1} parent=0 // pred_fallthru
    _
  // Predicated region
  $region46: #{tpu_custom_call.1} parent=0 // pred_check
    _
  $region47: #{tpu_custom_call.1} parent=0 // pred_check_branch
    %1237 = sbr.rel (0) target = $region49
  $region48: #{tpu_custom_call.1} parent=0 // pred_region
    _
  $region49: #{tpu_custom_call.1} parent=0 // pred_fallthru
    _

</llo_original>
